<compile_context>
chip_gen: v5e
topology: v5e:2x2
jax: 0.10.0
libtpu: 0.0.40
codegen_flags: <defaults>
</compile_context>

<pallas_src>
import functools

import jax
import jax.numpy as jnp
from jax.experimental import pallas as pl
from jax.experimental.pallas import tpu as pltpu


def _distance_block_kernel(gauss_coeff,
                           din_ref, slot_ref, pat_ref, reg_ref,
                           wf_ref, bf_ref, w2_ref, b2_ref,
                           o_ref):
    # Shapes (P = pack, TR = tile_e // P, K = P*C_in + 2P*ME):
    #   din_ref  (TR, 3P)       packed [distances | source ids | target ids], f32
    #   slot_ref (1, K)         per-lane slot index (0..3P-1), f32
    #   pat_ref  (1, K)         per-lane pattern: gaussian offset / element id
    #   reg_ref  (1, K)         1.0 on gaussian lanes, 0.0 on one-hot lanes
    #   wf_ref   (K, P*NB)      fused [fc1_dist^T ; src_emb ; tgt_emb], block-diag
    #   bf_ref   (1, P*NB)      fc1_dist bias (tiled)
    #   w2_ref   (P*NB, P*NB)   fc1_edge_attr^T, block-diag
    #   b2_ref   (1, P*NB)
    #   o_ref    (TR, P*NB)     lane-dense output (128 or 256 lanes)
    f32 = jnp.float32
    tr, n_slots = din_ref.shape
    k = slot_ref.shape[1]

    din = din_ref[...]
    slot = slot_ref[...]

    # --- lane replication on the VPU (no MXU selector matmuls) --------------
    # val[r, l] = din[r, slot(l)]: each packed scalar (distance or element id)
    # broadcast across its lane group via per-slot select against the constant
    # slot map.  Slots tile the lane space, so the chain covers every lane.
    val = jnp.broadcast_to(din[:, 0:1], (tr, k))
    for s in range(1, n_slots):
        val = jnp.where(slot == float(s), din[:, s:s + 1], val)

    # --- GaussianSmearing on distance lanes, exact one-hot on id lanes ------
    diff = val - pat_ref[...]
    gauss = jnp.exp(gauss_coeff * diff * diff)          # EUP (slack slot)
    onehot = (diff == 0.0).astype(f32)                  # exact: ids are small ints
    act = jnp.where(reg_ref[...] != 0.0, gauss, onehot)  # (TR, K)

    # --- fused fc1_dist + (source + target) embedding gather ----------------
    x = jnp.dot(act.astype(wf_ref.dtype), wf_ref[...],
                preferred_element_type=f32) + bf_ref[...]   # (TR, P*NB)
    x = x * jax.nn.sigmoid(x)                               # SiLU

    # --- fc1_edge_attr -> SiLU ----------------------------------------------
    y = jnp.dot(x.astype(w2_ref.dtype), w2_ref[...],
                preferred_element_type=f32) + b2_ref[...]
    o_ref[...] = (y * jax.nn.sigmoid(y)).astype(o_ref.dtype)


def _default_pack(num_basis):
    """Lane packing: fill one vreg (128 lanes) everywhere; 256 lanes on
    256-wide-MXU chips (v6e / v7x).  v5e keeps 128 (its MXUs are 128x128)."""
    lanes = 128
    try:
        kind = jax.devices()[0].device_kind.lower()
        if any(tag in kind for tag in ("v6", "v7", "tpu7")):
            lanes = 256
    except Exception:
        pass
    for width in (lanes, 128):
        if num_basis <= width and width % num_basis == 0:
            return width // num_basis
    return 1


def pack_params(params, pack=None, matmul_dtype=jnp.float32):
    """One-time repacking of DistanceBlock parameters into the lane-packed,
    fused layout.  matmul_dtype=jnp.bfloat16 is an opt-in fast path (not used
    by the tolerance check below: +/-1e-3 embeddings lose too much in bf16)."""
    f32 = jnp.float32
    offs = params["gauss_offsets"].astype(f32)            # (C_in,)
    w1 = params["fc1_dist_w"].astype(f32)                 # (C_in, NB) (= torch W.T)
    b1 = params["fc1_dist_b"].astype(f32)                 # (NB,)
    w2 = params["fc1_edge_w"].astype(f32)                 # (NB, NB)   (= torch W.T)
    b2 = params["fc1_edge_b"].astype(f32)                 # (NB,)
    src_tbl = params["source_embedding"].astype(f32)      # (ME, NB)
    tgt_tbl = params["target_embedding"].astype(f32)      # (ME, NB)

    C_in = offs.shape[0]
    ME, NB = src_tbl.shape
    P = int(pack) if pack is not None else int(_default_pack(NB))
    K = P * C_in + 2 * P * ME

    eye_p = jnp.eye(P, dtype=f32)

    # Per-lane constants.  Lane layout: [P groups of C_in gaussian lanes |
    # P groups of ME source-one-hot lanes | P groups of ME target-one-hot lanes]
    slot_map = jnp.concatenate([
        jnp.repeat(jnp.arange(P, dtype=f32), C_in),
        jnp.repeat(jnp.arange(P, 3 * P, dtype=f32), ME),
    ]).reshape(1, K)
    pattern = jnp.concatenate([
        jnp.tile(offs, P),
        jnp.tile(jnp.arange(ME, dtype=f32), 2 * P),
    ]).reshape(1, K)
    region = jnp.concatenate([
        jnp.ones((P * C_in,), f32),
        jnp.zeros((2 * P * ME,), f32),
    ]).reshape(1, K)

    # Fused block-diagonal weight: fc1_dist on the gaussian lanes, embedding
    # tables on the one-hot lanes (row order matches slot_map / pattern).
    wf = jnp.concatenate([
        jnp.kron(eye_p, w1),        # (P*C_in, P*NB)
        jnp.kron(eye_p, src_tbl),   # (P*ME,  P*NB)
        jnp.kron(eye_p, tgt_tbl),   # (P*ME,  P*NB)
    ], axis=0)                      # (K, P*NB)

    return {
        "pack": P,
        "in_channels": int(C_in),
        "num_basis": int(NB),
        "max_elem": int(ME),
        "k_fused": int(K),
        "gauss_coeff": float(params["gauss_coeff"]),
        "slot_map": slot_map,
        "pattern": pattern,
        "region": region,
        "wf_blk": wf.astype(matmul_dtype),
        "bf_blk": jnp.tile(b1, P).reshape(1, P * NB),
        "w2_blk": jnp.kron(eye_p, w2).astype(matmul_dtype),
        "b2_blk": jnp.tile(b2, P).reshape(1, P * NB),
    }


def distance_block_forward(edge_distance, source_element, target_element,
                           packed, *, tile_e=2048, return_packed=False):
    """edge_distance: (E,) f32; source/target_element: (E,) int32.
    Returns (E, NB) f32, or the packed (rows, P*NB) layout if return_packed
    (avoids a post-kernel lane-relayout copy for consumers that accept it)."""
    P = packed["pack"]
    NB = packed["num_basis"]
    K = packed["k_fused"]
    E = edge_distance.shape[0]

    step = 8 * P
    # Cap tile_e so there are >= 2 grid steps (keeps v7x's 2nd TensorCore busy
    # on the 'parallel' axis), and never below one (8,128)-aligned row group.
    half_tile = ((max(1, (E + 1) // 2) + step - 1) // step) * step
    tile_e = max(step, min(tile_e, half_tile))
    assert tile_e % step == 0, "tile_e must be a multiple of 8*pack"

    n_tiles = int(pl.cdiv(E, tile_e))
    E_pad = n_tiles * tile_e
    pad = E_pad - E
    rows = E_pad // P
    TR = tile_e // P

    # Glue: pad (distance 0 / element 0 are valid dummies, sliced off later),
    # pack P edges per row, and merge distances + ids into ONE f32 stream
    # (ids are small ints -> exact in f32).
    f32 = jnp.float32
    d = jnp.pad(edge_distance.astype(f32), (0, pad))
    s = jnp.pad(source_element, (0, pad)).astype(f32)
    t = jnp.pad(target_element, (0, pad)).astype(f32)
    din = jnp.concatenate([d.reshape(rows, P),
                           s.reshape(rows, P),
                           t.reshape(rows, P)], axis=1)        # (rows, 3P)

    tiled = lambda i: (i, 0)
    inv = lambda i: (0, 0)   # constant block index -> stays VMEM-resident

    kernel = functools.partial(_distance_block_kernel,
                               float(packed["gauss_coeff"]))

    out_packed = pl.pallas_call(
        kernel,
        out_shape=jax.ShapeDtypeStruct((rows, P * NB), jnp.float32),
        grid_spec=pltpu.PrefetchScalarGridSpec(
            num_scalar_prefetch=0,
            grid=(n_tiles,),
            in_specs=[
                pl.BlockSpec((TR, 3 * P), tiled),             # packed d | src | tgt
                pl.BlockSpec((1, K), inv),                    # slot map
                pl.BlockSpec((1, K), inv),                    # gaussian/id pattern
                pl.BlockSpec((1, K), inv),                    # region mask
                pl.BlockSpec((K, P * NB), inv),               # fused W (block-diag)
                pl.BlockSpec((1, P * NB), inv),               # fc1_dist bias
                pl.BlockSpec((P * NB, P * NB), inv),          # fc1_edge W^T
                pl.BlockSpec((1, P * NB), inv),               # fc1_edge bias
            ],
            out_specs=pl.BlockSpec((TR, P * NB), tiled),      # lane-dense output
        ),
        compiler_params=pltpu.CompilerParams(
            dimension_semantics=("parallel",)),
    )(din,
      packed["slot_map"], packed["pattern"], packed["region"],
      packed["wf_blk"], packed["bf_blk"], packed["w2_blk"], packed["b2_blk"])

    if return_packed:
        return out_packed                                     # (rows, P*NB)
    # (rows, P*NB) row-major == (E_pad, NB) row-major; drop padded edges.
    return out_packed.reshape(E_pad, NB)[:E]


def init_params(key, in_channels, num_basis_functions, max_num_elements,
                cutoff=8.0):
    """Deterministic synthetic parameters matching the module's shapes."""
    k1, k2, k3, k4, k5, k6 = jax.random.split(key, 6)
    C_in, NB = in_channels, num_basis_functions

    # GaussianSmearing(start=0, stop=cutoff, num_gaussians=in_channels)
    offsets = jnp.linspace(0.0, cutoff, C_in)
    delta = (offsets[1] - offsets[0]) if C_in > 1 else jnp.float32(1.0)
    gauss_coeff = -0.5 / float(delta) ** 2

    def linear_init(kw, kb, fan_in, fan_out):
        bound = 1.0 / (fan_in ** 0.5)
        w = jax.random.uniform(kw, (fan_in, fan_out), jnp.float32, -bound, bound)
        b = jax.random.uniform(kb, (fan_out,), jnp.float32, -bound, bound)
        return w, b

    w1, b1 = linear_init(k1, k2, C_in, NB)       # fc1_dist
    w2, b2 = linear_init(k3, k4, NB, NB)         # fc1_edge_attr

    src_emb = jax.random.uniform(k5, (max_num_elements, NB), jnp.float32,
                                 -0.001, 0.001)
    tgt_emb = jax.random.uniform(k6, (max_num_elements, NB), jnp.float32,
                                 -0.001, 0.001)

    return {
        "gauss_offsets": offsets.astype(jnp.float32),
        "gauss_coeff": gauss_coeff,
        "fc1_dist_w": w1, "fc1_dist_b": b1,
        "fc1_edge_w": w2, "fc1_edge_b": b2,
        "source_embedding": src_emb, "target_embedding": tgt_emb,
    }


def _reference(edge_distance, source_element, target_element, params):
    """Pure-JAX reference (mirrors the PyTorch forward), full-f32 matmuls."""
    hi = jax.lax.Precision.HIGHEST
    offs = params["gauss_offsets"]
    coeff = params["gauss_coeff"]
    x = jnp.exp(coeff * (edge_distance[:, None] - offs[None, :]) ** 2)
    x = jnp.dot(x, params["fc1_dist_w"], precision=hi) + params["fc1_dist_b"]
    src = params["source_embedding"][source_element]
    tgt = params["target_embedding"][target_element]
    h = jax.nn.silu(src + tgt + x)
    return jax.nn.silu(jnp.dot(h, params["fc1_edge_w"], precision=hi)
                       + params["fc1_edge_b"])


if __name__ == "__main__":
    # Small shapes consistent with the module.
    E = 1000                   # number of edges (NOT a multiple of tile_e)
    in_channels = 16           # Gaussian basis size
    num_basis_functions = 32   # edge channels
    max_num_elements = 10
    cutoff = 8.0

    key = jax.random.PRNGKey(0)
    kp, kd, ks, kt = jax.random.split(key, 4)

    params = init_params(kp, in_channels, num_basis_functions,
                         max_num_elements, cutoff)
    packed = pack_params(params)   # pack auto-selected: 4 (128 lanes) or 8 (256)

    edge_distance = jax.random.uniform(kd, (E,), jnp.float32, 0.1, cutoff)
    source_element = jax.random.randint(ks, (E,), 0, max_num_elements,
                                        dtype=jnp.int32)
    target_element = jax.random.randint(kt, (E,), 0, max_num_elements,
                                        dtype=jnp.int32)

    # tile_e=256 keeps a multi-step grid at this small E and exercises padding;
    # production default is 2048 (auto-capped to keep >= 2 grid steps).
    out = distance_block_forward(edge_distance, source_element, target_element,
                                 packed, tile_e=256)
    out = jax.block_until_ready(out)

    ref = _reference(edge_distance, source_element, target_element, params)
    assert out.shape == (E, num_basis_functions)
    max_err = float(jnp.max(jnp.abs(out - ref)))
    assert jnp.allclose(out, ref, atol=5e-5, rtol=5e-5), f"max abs err {max_err}"

    print("KERNEL_OK")
</pallas_src>

<mosaic_0001>
module attributes {stable_mosaic.version = 11 : i64} {
  func.func @_distance_block_kernel(%arg0: i32, %arg1: memref<64x12xf32, #tpu.memory_space<vmem>>, %arg2: memref<1x144xf32, #tpu.memory_space<vmem>>, %arg3: memref<1x144xf32, #tpu.memory_space<vmem>>, %arg4: memref<1x144xf32, #tpu.memory_space<vmem>>, %arg5: memref<144x128xf32, #tpu.memory_space<vmem>>, %arg6: memref<1x128xf32, #tpu.memory_space<vmem>>, %arg7: memref<128x128xf32, #tpu.memory_space<vmem>>, %arg8: memref<1x128xf32, #tpu.memory_space<vmem>>, %arg9: memref<64x128xf32, #tpu.memory_space<vmem>>) attributes {dimension_semantics = [#tpu.dimension_semantics<parallel>], iteration_bounds = array<i64: 4>, scalar_prefetch = 0 : i64, scratch_operands = 0 : i64, tpu.core_type = #tpu.core_type<tc>, window_params = [{transform_indices = @transform_0, window_bounds = array<i64: 64, 12>}, {pipeline_mode = #tpu.pipeline_mode<synchronous>, transform_indices = @transform_1, window_bounds = array<i64: 1, 144>}, {pipeline_mode = #tpu.pipeline_mode<synchronous>, transform_indices = @transform_2, window_bounds = array<i64: 1, 144>}, {pipeline_mode = #tpu.pipeline_mode<synchronous>, transform_indices = @transform_3, window_bounds = array<i64: 1, 144>}, {pipeline_mode = #tpu.pipeline_mode<synchronous>, transform_indices = @transform_4, window_bounds = array<i64: 144, 128>}, {pipeline_mode = #tpu.pipeline_mode<synchronous>, transform_indices = @transform_5, window_bounds = array<i64: 1, 128>}, {pipeline_mode = #tpu.pipeline_mode<synchronous>, transform_indices = @transform_6, window_bounds = array<i64: 128, 128>}, {pipeline_mode = #tpu.pipeline_mode<synchronous>, transform_indices = @transform_7, window_bounds = array<i64: 1, 128>}, {transform_indices = @transform_8, window_bounds = array<i64: 64, 128>}]} {
    %c0 = arith.constant 0 : index
    %c0_0 = arith.constant 0 : index
    %0 = vector.load %arg1[%c0, %c0_0] : memref<64x12xf32, #tpu.memory_space<vmem>>, vector<64x12xf32>
    %c0_1 = arith.constant 0 : index
    %c0_2 = arith.constant 0 : index
    %1 = vector.load %arg2[%c0_1, %c0_2] : memref<1x144xf32, #tpu.memory_space<vmem>>, vector<1x144xf32>
    %2 = vector.extract_strided_slice %0 {offsets = [0, 0], sizes = [64, 1], strides = [1, 1]} : vector<64x12xf32> to vector<64x1xf32>
    %3 = vector.shape_cast %2 : vector<64x1xf32> to vector<64x1xf32>
    %4 = vector.broadcast %3 : vector<64x1xf32> to vector<64x144xf32>
    %cst = arith.constant 1.000000e+00 : f32
    %5 = vector.broadcast %cst : f32 to vector<1x144xf32>
    %6 = arith.cmpf oeq, %1, %5 : vector<1x144xf32>
    %7 = vector.extract_strided_slice %0 {offsets = [0, 1], sizes = [64, 1], strides = [1, 1]} : vector<64x12xf32> to vector<64x1xf32>
    %8 = vector.shape_cast %6 : vector<1x144xi1> to vector<1x144xi1>
    %9 = vector.broadcast %8 : vector<1x144xi1> to vector<64x144xi1>
    %10 = vector.shape_cast %7 : vector<64x1xf32> to vector<64x1xf32>
    %11 = vector.broadcast %10 : vector<64x1xf32> to vector<64x144xf32>
    %12 = arith.select %9, %11, %4 : vector<64x144xi1>, vector<64x144xf32>
    %cst_3 = arith.constant 2.000000e+00 : f32
    %13 = vector.broadcast %cst_3 : f32 to vector<1x144xf32>
    %14 = arith.cmpf oeq, %1, %13 : vector<1x144xf32>
    %15 = vector.extract_strided_slice %0 {offsets = [0, 2], sizes = [64, 1], strides = [1, 1]} : vector<64x12xf32> to vector<64x1xf32>
    %16 = vector.shape_cast %14 : vector<1x144xi1> to vector<1x144xi1>
    %17 = vector.broadcast %16 : vector<1x144xi1> to vector<64x144xi1>
    %18 = vector.shape_cast %15 : vector<64x1xf32> to vector<64x1xf32>
    %19 = vector.broadcast %18 : vector<64x1xf32> to vector<64x144xf32>
    %20 = arith.select %17, %19, %12 : vector<64x144xi1>, vector<64x144xf32>
    %cst_4 = arith.constant 3.000000e+00 : f32
    %21 = vector.broadcast %cst_4 : f32 to vector<1x144xf32>
    %22 = arith.cmpf oeq, %1, %21 : vector<1x144xf32>
    %23 = vector.extract_strided_slice %0 {offsets = [0, 3], sizes = [64, 1], strides = [1, 1]} : vector<64x12xf32> to vector<64x1xf32>
    %24 = vector.shape_cast %22 : vector<1x144xi1> to vector<1x144xi1>
    %25 = vector.broadcast %24 : vector<1x144xi1> to vector<64x144xi1>
    %26 = vector.shape_cast %23 : vector<64x1xf32> to vector<64x1xf32>
    %27 = vector.broadcast %26 : vector<64x1xf32> to vector<64x144xf32>
    %28 = arith.select %25, %27, %20 : vector<64x144xi1>, vector<64x144xf32>
    %cst_5 = arith.constant 4.000000e+00 : f32
    %29 = vector.broadcast %cst_5 : f32 to vector<1x144xf32>
    %30 = arith.cmpf oeq, %1, %29 : vector<1x144xf32>
    %31 = vector.extract_strided_slice %0 {offsets = [0, 4], sizes = [64, 1], strides = [1, 1]} : vector<64x12xf32> to vector<64x1xf32>
    %32 = vector.shape_cast %30 : vector<1x144xi1> to vector<1x144xi1>
    %33 = vector.broadcast %32 : vector<1x144xi1> to vector<64x144xi1>
    %34 = vector.shape_cast %31 : vector<64x1xf32> to vector<64x1xf32>
    %35 = vector.broadcast %34 : vector<64x1xf32> to vector<64x144xf32>
    %36 = arith.select %33, %35, %28 : vector<64x144xi1>, vector<64x144xf32>
    %cst_6 = arith.constant 5.000000e+00 : f32
    %37 = vector.broadcast %cst_6 : f32 to vector<1x144xf32>
    %38 = arith.cmpf oeq, %1, %37 : vector<1x144xf32>
    %39 = vector.extract_strided_slice %0 {offsets = [0, 5], sizes = [64, 1], strides = [1, 1]} : vector<64x12xf32> to vector<64x1xf32>
    %40 = vector.shape_cast %38 : vector<1x144xi1> to vector<1x144xi1>
    %41 = vector.broadcast %40 : vector<1x144xi1> to vector<64x144xi1>
    %42 = vector.shape_cast %39 : vector<64x1xf32> to vector<64x1xf32>
    %43 = vector.broadcast %42 : vector<64x1xf32> to vector<64x144xf32>
    %44 = arith.select %41, %43, %36 : vector<64x144xi1>, vector<64x144xf32>
    %cst_7 = arith.constant 6.000000e+00 : f32
    %45 = vector.broadcast %cst_7 : f32 to vector<1x144xf32>
    %46 = arith.cmpf oeq, %1, %45 : vector<1x144xf32>
    %47 = vector.extract_strided_slice %0 {offsets = [0, 6], sizes = [64, 1], strides = [1, 1]} : vector<64x12xf32> to vector<64x1xf32>
    %48 = vector.shape_cast %46 : vector<1x144xi1> to vector<1x144xi1>
    %49 = vector.broadcast %48 : vector<1x144xi1> to vector<64x144xi1>
    %50 = vector.shape_cast %47 : vector<64x1xf32> to vector<64x1xf32>
    %51 = vector.broadcast %50 : vector<64x1xf32> to vector<64x144xf32>
    %52 = arith.select %49, %51, %44 : vector<64x144xi1>, vector<64x144xf32>
    %cst_8 = arith.constant 7.000000e+00 : f32
    %53 = vector.broadcast %cst_8 : f32 to vector<1x144xf32>
    %54 = arith.cmpf oeq, %1, %53 : vector<1x144xf32>
    %55 = vector.extract_strided_slice %0 {offsets = [0, 7], sizes = [64, 1], strides = [1, 1]} : vector<64x12xf32> to vector<64x1xf32>
    %56 = vector.shape_cast %54 : vector<1x144xi1> to vector<1x144xi1>
    %57 = vector.broadcast %56 : vector<1x144xi1> to vector<64x144xi1>
    %58 = vector.shape_cast %55 : vector<64x1xf32> to vector<64x1xf32>
    %59 = vector.broadcast %58 : vector<64x1xf32> to vector<64x144xf32>
    %60 = arith.select %57, %59, %52 : vector<64x144xi1>, vector<64x144xf32>
    %cst_9 = arith.constant 8.000000e+00 : f32
    %61 = vector.broadcast %cst_9 : f32 to vector<1x144xf32>
    %62 = arith.cmpf oeq, %1, %61 : vector<1x144xf32>
    %63 = vector.extract_strided_slice %0 {offsets = [0, 8], sizes = [64, 1], strides = [1, 1]} : vector<64x12xf32> to vector<64x1xf32>
    %64 = vector.shape_cast %62 : vector<1x144xi1> to vector<1x144xi1>
    %65 = vector.broadcast %64 : vector<1x144xi1> to vector<64x144xi1>
    %66 = vector.shape_cast %63 : vector<64x1xf32> to vector<64x1xf32>
    %67 = vector.broadcast %66 : vector<64x1xf32> to vector<64x144xf32>
    %68 = arith.select %65, %67, %60 : vector<64x144xi1>, vector<64x144xf32>
    %cst_10 = arith.constant 9.000000e+00 : f32
    %69 = vector.broadcast %cst_10 : f32 to vector<1x144xf32>
    %70 = arith.cmpf oeq, %1, %69 : vector<1x144xf32>
    %71 = vector.extract_strided_slice %0 {offsets = [0, 9], sizes = [64, 1], strides = [1, 1]} : vector<64x12xf32> to vector<64x1xf32>
    %72 = vector.shape_cast %70 : vector<1x144xi1> to vector<1x144xi1>
    %73 = vector.broadcast %72 : vector<1x144xi1> to vector<64x144xi1>
    %74 = vector.shape_cast %71 : vector<64x1xf32> to vector<64x1xf32>
    %75 = vector.broadcast %74 : vector<64x1xf32> to vector<64x144xf32>
    %76 = arith.select %73, %75, %68 : vector<64x144xi1>, vector<64x144xf32>
    %cst_11 = arith.constant 1.000000e+01 : f32
    %77 = vector.broadcast %cst_11 : f32 to vector<1x144xf32>
    %78 = arith.cmpf oeq, %1, %77 : vector<1x144xf32>
    %79 = vector.extract_strided_slice %0 {offsets = [0, 10], sizes = [64, 1], strides = [1, 1]} : vector<64x12xf32> to vector<64x1xf32>
    %80 = vector.shape_cast %78 : vector<1x144xi1> to vector<1x144xi1>
    %81 = vector.broadcast %80 : vector<1x144xi1> to vector<64x144xi1>
    %82 = vector.shape_cast %79 : vector<64x1xf32> to vector<64x1xf32>
    %83 = vector.broadcast %82 : vector<64x1xf32> to vector<64x144xf32>
    %84 = arith.select %81, %83, %76 : vector<64x144xi1>, vector<64x144xf32>
    %cst_12 = arith.constant 1.100000e+01 : f32
    %85 = vector.broadcast %cst_12 : f32 to vector<1x144xf32>
    %86 = arith.cmpf oeq, %1, %85 : vector<1x144xf32>
    %87 = vector.extract_strided_slice %0 {offsets = [0, 11], sizes = [64, 1], strides = [1, 1]} : vector<64x12xf32> to vector<64x1xf32>
    %88 = vector.shape_cast %86 : vector<1x144xi1> to vector<1x144xi1>
    %89 = vector.broadcast %88 : vector<1x144xi1> to vector<64x144xi1>
    %90 = vector.shape_cast %87 : vector<64x1xf32> to vector<64x1xf32>
    %91 = vector.broadcast %90 : vector<64x1xf32> to vector<64x144xf32>
    %92 = arith.select %89, %91, %84 : vector<64x144xi1>, vector<64x144xf32>
    %c0_13 = arith.constant 0 : index
    %c0_14 = arith.constant 0 : index
    %93 = vector.load %arg3[%c0_13, %c0_14] : memref<1x144xf32, #tpu.memory_space<vmem>>, vector<1x144xf32>
    %94 = vector.broadcast %93 : vector<1x144xf32> to vector<64x144xf32>
    %95 = arith.subf %92, %94 : vector<64x144xf32>
    %cst_15 = arith.constant -1.75781226 : f32
    %96 = vector.broadcast %cst_15 : f32 to vector<64x144xf32>
    %97 = arith.mulf %96, %95 : vector<64x144xf32>
    %98 = arith.mulf %97, %95 : vector<64x144xf32>
    %99 = math.exp %98 : vector<64x144xf32>
    %cst_16 = arith.constant 0.000000e+00 : f32
    %100 = vector.broadcast %cst_16 : f32 to vector<64x144xf32>
    %101 = arith.cmpf oeq, %95, %100 : vector<64x144xf32>
    %102 = arith.extui %101 : vector<64x144xi1> to vector<64x144xi32>
    %103 = arith.sitofp %102 : vector<64x144xi32> to vector<64x144xf32>
    %c0_17 = arith.constant 0 : index
    %c0_18 = arith.constant 0 : index
    %104 = vector.load %arg4[%c0_17, %c0_18] : memref<1x144xf32, #tpu.memory_space<vmem>>, vector<1x144xf32>
    %cst_19 = arith.constant 0.000000e+00 : f32
    %105 = vector.broadcast %cst_19 : f32 to vector<1x144xf32>
    %106 = arith.cmpf one, %104, %105 : vector<1x144xf32>
    %107 = vector.shape_cast %106 : vector<1x144xi1> to vector<1x144xi1>
    %108 = vector.broadcast %107 : vector<1x144xi1> to vector<64x144xi1>
    %109 = arith.select %108, %99, %103 : vector<64x144xi1>, vector<64x144xf32>
    %c0_20 = arith.constant 0 : index
    %c0_21 = arith.constant 0 : index
    %110 = vector.load %arg5[%c0_20, %c0_21] : memref<144x128xf32, #tpu.memory_space<vmem>>, vector<144x128xf32>
    %cst_22 = arith.constant dense<0.000000e+00> : vector<64x128xf32>
    %111 = tpu.matmul %109, %110, %cst_22 {dimension_numbers = #tpu.dot_dimension_numbers<[1], [0], [0], [1], [0, 0, 1, 1], [], []>} : vector<64x144xf32>, vector<144x128xf32>, vector<64x128xf32> -> vector<64x128xf32>
    %c0_23 = arith.constant 0 : index
    %c0_24 = arith.constant 0 : index
    %112 = vector.load %arg6[%c0_23, %c0_24] : memref<1x128xf32, #tpu.memory_space<vmem>>, vector<1x128xf32>
    %113 = vector.broadcast %112 : vector<1x128xf32> to vector<64x128xf32>
    %114 = arith.addf %111, %113 : vector<64x128xf32>
    %115 = arith.negf %114 : vector<64x128xf32>
    %116 = math.exp %115 : vector<64x128xf32>
    %cst_25 = arith.constant 1.000000e+00 : f32
    %117 = vector.broadcast %cst_25 : f32 to vector<64x128xf32>
    %118 = arith.addf %117, %116 : vector<64x128xf32>
    %119 = arith.divf %117, %118 : vector<64x128xf32>
    %120 = arith.mulf %114, %119 : vector<64x128xf32>
    %c0_26 = arith.constant 0 : index
    %c0_27 = arith.constant 0 : index
    %121 = vector.load %arg7[%c0_26, %c0_27] : memref<128x128xf32, #tpu.memory_space<vmem>>, vector<128x128xf32>
    %cst_28 = arith.constant dense<0.000000e+00> : vector<64x128xf32>
    %122 = tpu.matmul %120, %121, %cst_28 {dimension_numbers = #tpu.dot_dimension_numbers<[1], [0], [0], [1], [0, 0, 1, 1], [], []>} : vector<64x128xf32>, vector<128x128xf32>, vector<64x128xf32> -> vector<64x128xf32>
    %c0_29 = arith.constant 0 : index
    %c0_30 = arith.constant 0 : index
    %123 = vector.load %arg8[%c0_29, %c0_30] : memref<1x128xf32, #tpu.memory_space<vmem>>, vector<1x128xf32>
    %124 = vector.broadcast %123 : vector<1x128xf32> to vector<64x128xf32>
    %125 = arith.addf %122, %124 : vector<64x128xf32>
    %126 = arith.negf %125 : vector<64x128xf32>
    %127 = math.exp %126 : vector<64x128xf32>
    %cst_31 = arith.constant 1.000000e+00 : f32
    %128 = vector.broadcast %cst_31 : f32 to vector<64x128xf32>
    %129 = arith.addf %128, %127 : vector<64x128xf32>
    %130 = arith.divf %128, %129 : vector<64x128xf32>
    %131 = arith.mulf %125, %130 : vector<64x128xf32>
    %c0_32 = arith.constant 0 : index
    %c0_33 = arith.constant 0 : index
    %132 = vector.load %arg9[%c0_32, %c0_33] : memref<64x128xf32, #tpu.memory_space<vmem>>, vector<64x128xf32>
    tpu.vector_store %arg9[%c0_32, %c0_33], %131 {strides = array<i32>} : memref<64x128xf32, #tpu.memory_space<vmem>>, vector<64x128xf32>,
    return
  }
  func.func @transform_0(%arg0: i32) -> (i32, i32) {
    %c0_i32 = arith.constant 0 : i32
    %c0_i32_0 = arith.constant 0 : i32
    return %arg0, %c0_i32 : i32, i32
  }
  func.func @transform_1(%arg0: i32) -> (i32, i32) {
    %c0_i32 = arith.constant 0 : i32
    %c0_i32_0 = arith.constant 0 : i32
    %c0_i32_1 = arith.constant 0 : i32
    return %c0_i32, %c0_i32_0 : i32, i32
  }
  func.func @transform_2(%arg0: i32) -> (i32, i32) {
    %c0_i32 = arith.constant 0 : i32
    %c0_i32_0 = arith.constant 0 : i32
    %c0_i32_1 = arith.constant 0 : i32
    return %c0_i32, %c0_i32_0 : i32, i32
  }
  func.func @transform_3(%arg0: i32) -> (i32, i32) {
    %c0_i32 = arith.constant 0 : i32
    %c0_i32_0 = arith.constant 0 : i32
    %c0_i32_1 = arith.constant 0 : i32
    return %c0_i32, %c0_i32_0 : i32, i32
  }
  func.func @transform_4(%arg0: i32) -> (i32, i32) {
    %c0_i32 = arith.constant 0 : i32
    %c0_i32_0 = arith.constant 0 : i32
    %c0_i32_1 = arith.constant 0 : i32
    return %c0_i32, %c0_i32_0 : i32, i32
  }
  func.func @transform_5(%arg0: i32) -> (i32, i32) {
    %c0_i32 = arith.constant 0 : i32
    %c0_i32_0 = arith.constant 0 : i32
    %c0_i32_1 = arith.constant 0 : i32
    return %c0_i32, %c0_i32_0 : i32, i32
  }
  func.func @transform_6(%arg0: i32) -> (i32, i32) {
    %c0_i32 = arith.constant 0 : i32
    %c0_i32_0 = arith.constant 0 : i32
    %c0_i32_1 = arith.constant 0 : i32
    return %c0_i32, %c0_i32_0 : i32, i32
  }
  func.func @transform_7(%arg0: i32) -> (i32, i32) {
    %c0_i32 = arith.constant 0 : i32
    %c0_i32_0 = arith.constant 0 : i32
    %c0_i32_1 = arith.constant 0 : i32
    return %c0_i32, %c0_i32_0 : i32, i32
  }
  func.func @transform_8(%arg0: i32) -> (i32, i32) {
    %c0_i32 = arith.constant 0 : i32
    %c0_i32_0 = arith.constant 0 : i32
    return %arg0, %c0_i32 : i32, i32
  }
}

</mosaic_0001>

<llo_original>
// kernel: tpu_custom_call.1
$region0: #{tpu_custom_call.1}
  #allocation0 [shape = 'u32[]', space=smem, size = 0x4, offset = 0x4, fixed_abs, tag = 'smem constant byte address 0x4 - core index']
  #allocation1 [shape = 'u32[72,128]{1,0:T(1,128)}', space=vmem, size = 0x9000, scoped, tag = 'internal scratch']
  %s0 = inlined_call_operand.vmem [shape: f32[256,12], index: 0, kind: input, shape index: {}]
  %s1 = inlined_call_operand.vmem [shape: f32[1,144], index: 1, kind: input, shape index: {}]
  %s2 = inlined_call_operand.vmem [shape: f32[1,144], index: 2, kind: input, shape index: {}]
  %s3 = inlined_call_operand.vmem [shape: f32[1,144], index: 3, kind: input, shape index: {}]
  %s4 = inlined_call_operand.vmem [shape: f32[144,128], index: 4, kind: input, shape index: {}]
  %s5 = inlined_call_operand.vmem [shape: f32[1,128], index: 5, kind: input, shape index: {}]
  %s6 = inlined_call_operand.vmem [shape: f32[128,128], index: 6, kind: input, shape index: {}]
  %s7 = inlined_call_operand.vmem [shape: f32[1,128], index: 7, kind: input, shape index: {}]
  %s8 = inlined_call_operand.hbm [shape: f32[256,128], index: 8, kind: output, shape index: {}]
  %s9 = sld [smem:[#allocation0]]
  $region65: #{tpu_custom_call.1} parent=0
    _
  %s11 = ssub.s32 1, %s9
  %s12 = scalar_select 0, %s11, %s9
  $region1: #{tpu_custom_call.1} parent=0
    #allocation2 [shape = 'u8[65536]{0}', space=vmem, size = 0x10000, scoped, tag = 'output window, operand 0']
    #allocation3 [shape = 's32[2]{0}', space=sflag, size = 0x8, scoped, tag = 'scoped memory for tpu_custom_call.1']
    %13 = vsyncpa [#allocation3], 0
    %s14 = scalar_lea.sflag [#allocation3], 1
    %15 = vsyncpa %s14, 0
    loop: start=0, step=1, limit=6
    $region2: #{tpu_custom_call.1} parent=1 // loop_pre_header
      _
    $region3: #{tpu_custom_call.1} parent=1 // loop_header
      %s17 = sphi 0, %s21
      %p18 = scmp.ge.s32.totalorder %s17, 6
      %s27 = sphi 0, %s29
      %s30 = sphi 0, %s27
      %s31 = sphi 0, %s30
      %s47 = sphi 0, %s31
      %s51 = sphi 0, %s51
      %s53 = sphi 0, %s51
      %s54 = sphi 0, %s53
      %s68 = sphi 0, %s54
      %s72 = sphi 0, %s72
      %s74 = sphi 0, %s72
      %s75 = sphi 0, %s74
      %s89 = sphi 0, %s75
      %s93 = sphi 0, %s93
      %s95 = sphi 0, %s93
      %s96 = sphi 0, %s95
      %s110 = sphi 0, %s96
      %s114 = sphi 0, %s114
      %s116 = sphi 0, %s114
      %s117 = sphi 0, %s116
      %s131 = sphi 0, %s117
      %s135 = sphi 0, %s135
      %s137 = sphi 0, %s135
      %s138 = sphi 0, %s137
      %s152 = sphi 0, %s138
      %s156 = sphi 0, %s156
      %s158 = sphi 0, %s156
      %s159 = sphi 0, %s158
      %s173 = sphi 0, %s159
      %s177 = sphi 0, %s177
      %s179 = sphi 0, %s177
      %s180 = sphi 0, %s179
      %s194 = sphi 0, %s180
      %s200 = sphi 0, %s202
      %s203 = sphi 0, %s200
      %s204 = sphi 0, %s203
      %s220 = sphi 0, %s204
    $region4: #{tpu_custom_call.1} parent=1 // loop_header_branch
      %20 = sbr.rel (%p18) target = $region8
    $region5: #{tpu_custom_call.1} parent=1 // loop_body
      %s22 = ssub.s32 %s17, 1
      %s23 = ssub.s32 %s17, 2
      %s24 = sadd.s32 %s17, 1
      %s25 = ssub.s32 %s17, %s24
      %p26 = scmp.eq.s32.totalorder %s25, 0
      %s28 = sadd.s32 %s27, 1
      %s29 = scalar_select %p26, %s27, %s28
      %p32 = pneg %p26
      %p33 = scmp.eq.s32.totalorder %s17, 3
      %p34 = por %p32, %p33
      %p35 = scmp.ne.s32.totalorder %s27, %s30
      %p36 = scmp.eq.s32.totalorder %s17, 0
      %p37 = por %p35, %p36
      %p38 = scmp.ne.s32.totalorder %s27, %s30
      %p39 = scmp.eq.s32.totalorder %s22, 3
      %p40 = por %p38, %p39
      %p41 = scmp.ne.s32.totalorder %s30, %s31
      %p42 = scmp.eq.s32.totalorder %s22, 0
      %p43 = por %p41, %p42
      %p44 = scmp.ne.s32.totalorder %s30, %s31
      %p45 = scmp.eq.s32.totalorder %s23, 3
      %p46 = por %p44, %p45
      %p48 = scmp.ne.s32.totalorder %s31, %s47
      %p49 = scmp.eq.s32.totalorder %s23, 0
      %p50 = por %p48, %p49
      %s52 = sadd.s32 %s51, 1
      %p55 = scmp.eq.s32.totalorder %s17, 3
      %p56 = scmp.ne.s32.totalorder %s51, %s53
      %p57 = scmp.eq.s32.totalorder %s17, 0
      %p58 = por %p56, %p57
      %p59 = scmp.ne.s32.totalorder %s51, %s53
      %p60 = scmp.eq.s32.totalorder %s22, 3
      %p61 = por %p59, %p60
      %p62 = scmp.ne.s32.totalorder %s53, %s54
      %p63 = scmp.eq.s32.totalorder %s22, 0
      %p64 = por %p62, %p63
      %p65 = scmp.ne.s32.totalorder %s53, %s54
      %p66 = scmp.eq.s32.totalorder %s23, 3
      %p67 = por %p65, %p66
      %p69 = scmp.ne.s32.totalorder %s54, %s68
      %p70 = scmp.eq.s32.totalorder %s23, 0
      %p71 = por %p69, %p70
      %s73 = sadd.s32 %s72, 1
      %p76 = scmp.eq.s32.totalorder %s17, 3
      %p77 = scmp.ne.s32.totalorder %s72, %s74
      %p78 = scmp.eq.s32.totalorder %s17, 0
      %p79 = por %p77, %p78
      %p80 = scmp.ne.s32.totalorder %s72, %s74
      %p81 = scmp.eq.s32.totalorder %s22, 3
      %p82 = por %p80, %p81
      %p83 = scmp.ne.s32.totalorder %s74, %s75
      %p84 = scmp.eq.s32.totalorder %s22, 0
      %p85 = por %p83, %p84
      %p86 = scmp.ne.s32.totalorder %s74, %s75
      %p87 = scmp.eq.s32.totalorder %s23, 3
      %p88 = por %p86, %p87
      %p90 = scmp.ne.s32.totalorder %s75, %s89
      %p91 = scmp.eq.s32.totalorder %s23, 0
      %p92 = por %p90, %p91
      %s94 = sadd.s32 %s93, 1
      %p97 = scmp.eq.s32.totalorder %s17, 3
      %p98 = scmp.ne.s32.totalorder %s93, %s95
      %p99 = scmp.eq.s32.totalorder %s17, 0
      %p100 = por %p98, %p99
      %p101 = scmp.ne.s32.totalorder %s93, %s95
      %p102 = scmp.eq.s32.totalorder %s22, 3
      %p103 = por %p101, %p102
      %p104 = scmp.ne.s32.totalorder %s95, %s96
      %p105 = scmp.eq.s32.totalorder %s22, 0
      %p106 = por %p104, %p105
      %p107 = scmp.ne.s32.totalorder %s95, %s96
      %p108 = scmp.eq.s32.totalorder %s23, 3
      %p109 = por %p107, %p108
      %p111 = scmp.ne.s32.totalorder %s96, %s110
      %p112 = scmp.eq.s32.totalorder %s23, 0
      %p113 = por %p111, %p112
      %s115 = sadd.s32 %s114, 1
      %p118 = scmp.eq.s32.totalorder %s17, 3
      %p119 = scmp.ne.s32.totalorder %s114, %s116
      %p120 = scmp.eq.s32.totalorder %s17, 0
      %p121 = por %p119, %p120
      %p122 = scmp.ne.s32.totalorder %s114, %s116
      %p123 = scmp.eq.s32.totalorder %s22, 3
      %p124 = por %p122, %p123
      %p125 = scmp.ne.s32.totalorder %s116, %s117
      %p126 = scmp.eq.s32.totalorder %s22, 0
      %p127 = por %p125, %p126
      %p128 = scmp.ne.s32.totalorder %s116, %s117
      %p129 = scmp.eq.s32.totalorder %s23, 3
      %p130 = por %p128, %p129
      %p132 = scmp.ne.s32.totalorder %s117, %s131
      %p133 = scmp.eq.s32.totalorder %s23, 0
      %p134 = por %p132, %p133
      %s136 = sadd.s32 %s135, 1
      %p139 = scmp.eq.s32.totalorder %s17, 3
      %p140 = scmp.ne.s32.totalorder %s135, %s137
      %p141 = scmp.eq.s32.totalorder %s17, 0
      %p142 = por %p140, %p141
      %p143 = scmp.ne.s32.totalorder %s135, %s137
      %p144 = scmp.eq.s32.totalorder %s22, 3
      %p145 = por %p143, %p144
      %p146 = scmp.ne.s32.totalorder %s137, %s138
      %p147 = scmp.eq.s32.totalorder %s22, 0
      %p148 = por %p146, %p147
      %p149 = scmp.ne.s32.totalorder %s137, %s138
      %p150 = scmp.eq.s32.totalorder %s23, 3
      %p151 = por %p149, %p150
      %p153 = scmp.ne.s32.totalorder %s138, %s152
      %p154 = scmp.eq.s32.totalorder %s23, 0
      %p155 = por %p153, %p154
      %s157 = sadd.s32 %s156, 1
      %p160 = scmp.eq.s32.totalorder %s17, 3
      %p161 = scmp.ne.s32.totalorder %s156, %s158
      %p162 = scmp.eq.s32.totalorder %s17, 0
      %p163 = por %p161, %p162
      %p164 = scmp.ne.s32.totalorder %s156, %s158
      %p165 = scmp.eq.s32.totalorder %s22, 3
      %p166 = por %p164, %p165
      %p167 = scmp.ne.s32.totalorder %s158, %s159
      %p168 = scmp.eq.s32.totalorder %s22, 0
      %p169 = por %p167, %p168
      %p170 = scmp.ne.s32.totalorder %s158, %s159
      %p171 = scmp.eq.s32.totalorder %s23, 3
      %p172 = por %p170, %p171
      %p174 = scmp.ne.s32.totalorder %s159, %s173
      %p175 = scmp.eq.s32.totalorder %s23, 0
      %p176 = por %p174, %p175
      %s178 = sadd.s32 %s177, 1
      %p181 = scmp.eq.s32.totalorder %s17, 3
      %p182 = scmp.ne.s32.totalorder %s177, %s179
      %p183 = scmp.eq.s32.totalorder %s17, 0
      %p184 = por %p182, %p183
      %p185 = scmp.ne.s32.totalorder %s177, %s179
      %p186 = scmp.eq.s32.totalorder %s22, 3
      %p187 = por %p185, %p186
      %p188 = scmp.ne.s32.totalorder %s179, %s180
      %p189 = scmp.eq.s32.totalorder %s22, 0
      %p190 = por %p188, %p189
      %p191 = scmp.ne.s32.totalorder %s179, %s180
      %p192 = scmp.eq.s32.totalorder %s23, 3
      %p193 = por %p191, %p192
      %p195 = scmp.ne.s32.totalorder %s180, %s194
      %p196 = scmp.eq.s32.totalorder %s23, 0
      %p197 = por %p195, %p196
      %s198 = ssub.s32 %s17, %s24
      %p199 = scmp.eq.s32.totalorder %s198, 0
      %s201 = sadd.s32 %s200, 1
      %s202 = scalar_select %p199, %s200, %s201
      %p205 = pneg %p199
      %p206 = scmp.eq.s32.totalorder %s17, 3
      %p207 = por %p205, %p206
      %p208 = scmp.ne.s32.totalorder %s200, %s203
      %p209 = scmp.eq.s32.totalorder %s17, 0
      %p210 = por %p208, %p209
      %p211 = scmp.ne.s32.totalorder %s200, %s203
      %p212 = scmp.eq.s32.totalorder %s22, 3
      %p213 = por %p211, %p212
      %p214 = scmp.ne.s32.totalorder %s203, %s204
      %p215 = scmp.eq.s32.totalorder %s22, 0
      %p216 = por %p214, %p215
      %p217 = scmp.ne.s32.totalorder %s203, %s204
      %p218 = scmp.eq.s32.totalorder %s23, 3
      %p219 = por %p217, %p218
      %p221 = scmp.ne.s32.totalorder %s204, %s220
      %p222 = scmp.eq.s32.totalorder %s23, 0
      %p223 = por %p221, %p222
      %p224 = scmp.le.s32.totalorder 1, %s17
      %p225 = scmp.lt.s32.totalorder %s17, 5
      %p226 = pnand %p224, %p225
      %p227 = pneg %p226
      // Predicated region
      $region9: #{tpu_custom_call.1} parent=5 // pred_check
        _
      $region10: #{tpu_custom_call.1} parent=5 // pred_check_branch
        %229 = sbr.rel (%p226) target = $region12
      $region11: #{tpu_custom_call.1} parent=5 // pred_region
        %s230 = ssub.s32 %s17, 1
        // Predicated region
        $region13: #{tpu_custom_call.1} parent=11 // pred_check
          %p231 = pneg %p64
        $region14: #{tpu_custom_call.1} parent=11 // pred_check_branch
          %233 = sbr.rel (%p231) target = $region16
        $region15: #{tpu_custom_call.1} parent=11 // pred_region
          _
        $region16: #{tpu_custom_call.1} parent=11 // pred_fallthru
          _
        // Predicated region
        $region17: #{tpu_custom_call.1} parent=11 // pred_check
          %p234 = pneg %p85
        $region18: #{tpu_custom_call.1} parent=11 // pred_check_branch
          %236 = sbr.rel (%p234) target = $region20
        $region19: #{tpu_custom_call.1} parent=11 // pred_region
          _
        $region20: #{tpu_custom_call.1} parent=11 // pred_fallthru
          _
        // Predicated region
        $region21: #{tpu_custom_call.1} parent=11 // pred_check
          %p237 = pneg %p106
        $region22: #{tpu_custom_call.1} parent=11 // pred_check_branch
          %239 = sbr.rel (%p237) target = $region24
        $region23: #{tpu_custom_call.1} parent=11 // pred_region
          _
        $region24: #{tpu_custom_call.1} parent=11 // pred_fallthru
          _
        // Predicated region
        $region25: #{tpu_custom_call.1} parent=11 // pred_check
          %p240 = pneg %p127
        $region26: #{tpu_custom_call.1} parent=11 // pred_check_branch
          %242 = sbr.rel (%p240) target = $region28
        $region27: #{tpu_custom_call.1} parent=11 // pred_region
          _
        $region28: #{tpu_custom_call.1} parent=11 // pred_fallthru
          _
        // Predicated region
        $region29: #{tpu_custom_call.1} parent=11 // pred_check
          %p243 = pneg %p148
        $region30: #{tpu_custom_call.1} parent=11 // pred_check_branch
          %245 = sbr.rel (%p243) target = $region32
        $region31: #{tpu_custom_call.1} parent=11 // pred_region
          _
        $region32: #{tpu_custom_call.1} parent=11 // pred_fallthru
          _
        // Predicated region
        $region33: #{tpu_custom_call.1} parent=11 // pred_check
          %p246 = pneg %p169
        $region34: #{tpu_custom_call.1} parent=11 // pred_check_branch
          %248 = sbr.rel (%p246) target = $region36
        $region35: #{tpu_custom_call.1} parent=11 // pred_region
          _
        $region36: #{tpu_custom_call.1} parent=11 // pred_fallthru
          _
        // Predicated region
        $region37: #{tpu_custom_call.1} parent=11 // pred_check
          %p249 = pneg %p190
        $region38: #{tpu_custom_call.1} parent=11 // pred_check_branch
          %251 = sbr.rel (%p249) target = $region40
        $region39: #{tpu_custom_call.1} parent=11 // pred_region
          _
        $region40: #{tpu_custom_call.1} parent=11 // pred_fallthru
          _
      $region12: #{tpu_custom_call.1} parent=5 // pred_fallthru
        _
      %p252 = scmp.lt.s32.totalorder %s17, 4
      // Predicated region
      $region41: #{tpu_custom_call.1} parent=5 // pred_check
        %p253 = pneg %p252
      $region42: #{tpu_custom_call.1} parent=5 // pred_check_branch
        %255 = sbr.rel (%p253) target = $region44
      $region43: #{tpu_custom_call.1} parent=5 // pred_region
        // Predicated region
        $region45: #{tpu_custom_call.1} parent=43 // pred_check
          %p256 = pneg %p37
        $region46: #{tpu_custom_call.1} parent=43 // pred_check_branch
          %258 = sbr.rel (%p256) target = $region48
        $region47: #{tpu_custom_call.1} parent=43 // pred_region
          %s259 = smul.u32 8, %s17
          %p260 = scmp.lt.s32.totalorder %s259, 31
          %s261 = scalar_select %p260, %s259, 31
          %s262 = smul.addr %s261, 8
          %s263 = scalar_lea.vmem %s0, %s262
          %s264 = smul.u32 8, %s17
        $region48: #{tpu_custom_call.1} parent=43 // pred_fallthru
          _
      $region44: #{tpu_custom_call.1} parent=5 // pred_fallthru
        _
      %p265 = scmp.le.s32.totalorder 1, %s17
      %p266 = scmp.lt.s32.totalorder %s17, 5
      %p267 = pnand %p265, %p266
      %p268 = pneg %p267
      // Predicated region
      $region49: #{tpu_custom_call.1} parent=5 // pred_check
        _
      $region50: #{tpu_custom_call.1} parent=5 // pred_check_branch
        %270 = sbr.rel (%p267) target = $region52
      $region51: #{tpu_custom_call.1} parent=5 // pred_region
        %s271 = ssub.s32 %s17, 1
        %s272 = smul.u32 8, %s22
        %p273 = scmp.lt.s32.totalorder %s272, 31
        %s274 = scalar_select %p273, %s272, 31
        %s275 = smul.addr %s274, 8
        %s276 = scalar_lea.vmem %s0, %s275
        %p277 = pneg %p43
        %p278 = pneg %p40
        %p279 = pneg %p64
        %p280 = pneg %p61
        %p281 = pneg %p85
        %p282 = pneg %p82
        %p283 = pneg %p106
        %p284 = pneg %p103
        %p285 = pneg %p127
        %p286 = pneg %p124
        %p287 = pneg %p148
        %p288 = pneg %p145
        %p289 = pneg %p169
        %p290 = pneg %p166
        %p291 = pneg %p190
        %p292 = pneg %p187
        %p293 = pneg %p216
        %p294 = pneg %p213
        %s295 = sand.u32 %s203, 1
        %s296 = scalar_lea.sflag [#allocation3], %s295
        %s297 = sand.u32 %s203, 1
        %s298 = smul.addr %s297, 64
        %s299 = scalar_lea.vmem [#allocation2], %s298
        %s300 = smul.u32 8, %s22
        %p301 = scmp.lt.s32.totalorder %s300, 31
        %s302 = scalar_select %p301, %s300, 31
        %s303 = smul.addr %s302, 8
        %s304 = scalar_lea.vmem %s0, %s303
        %s305 = smul.u32 8, %s22
        %s306 = smul.u32 8, %s22
        %v307 = vld [vmem:[%s304] sm:$0xff]
        %v308 = vld [vmem:[%s304 + $0x8] sm:$0xff]
        %v309 = vld [vmem:[%s304 + $0x10] sm:$0xff]
        %v310 = vld [vmem:[%s304 + $0x18] sm:$0xff]
        %v311 = vld [vmem:[%s304 + $0x20] sm:$0xff]
        %v312 = vld [vmem:[%s304 + $0x28] sm:$0xff]
        %v313 = vld [vmem:[%s304 + $0x30] sm:$0xff]
        %v314 = vld [vmem:[%s304 + $0x38] sm:$0xff]
        %v315 = vld [vmem:[%s1] sm:$0x3]
        %317 = vset.pattern.permute.xlu0 0
        %318 = vperm.xlu0 %317, %v307
        %v319 = vpop.permute.xlu0 %318
        %322 = vset.pattern.permute.xlu0 0
        %323 = vperm.xlu0 %322, %v308
        %v324 = vpop.permute.xlu0 %323
        %327 = vset.pattern.permute.xlu0 0
        %328 = vperm.xlu0 %327, %v309
        %v329 = vpop.permute.xlu0 %328
        %332 = vset.pattern.permute.xlu0 0
        %333 = vperm.xlu0 %332, %v310
        %v334 = vpop.permute.xlu0 %333
        %337 = vset.pattern.permute.xlu0 0
        %338 = vperm.xlu0 %337, %v311
        %v339 = vpop.permute.xlu0 %338
        %342 = vset.pattern.permute.xlu0 0
        %343 = vperm.xlu0 %342, %v312
        %v344 = vpop.permute.xlu0 %343
        %347 = vset.pattern.permute.xlu0 0
        %348 = vperm.xlu0 %347, %v313
        %v349 = vpop.permute.xlu0 %348
        %352 = vset.pattern.permute.xlu0 0
        %353 = vperm.xlu0 %352, %v314
        %v354 = vpop.permute.xlu0 %353
        %vm356 = vcmp.eq.f32.partialorder %v315, 1.0
        %v357 = vsel %vm356, 1, 0
        %v358 = vperm.slane %v357, 0
        %v359 = vperm.slane %v357, 1
        %vm360 = vcmp.eq.s32.totalorder %v358, 1
        %vm361 = vcmp.eq.s32.totalorder %v359, 1
        %362 = vset.pattern.permute.xlu0 1
        %363 = vperm.xlu0 %362, %v307
        %v364 = vpop.permute.xlu0 %363
        %366 = vset.pattern.permute.xlu0 1
        %367 = vperm.xlu0 %366, %v308
        %v368 = vpop.permute.xlu0 %367
        %370 = vset.pattern.permute.xlu0 1
        %371 = vperm.xlu0 %370, %v309
        %v372 = vpop.permute.xlu0 %371
        %374 = vset.pattern.permute.xlu0 1
        %375 = vperm.xlu0 %374, %v310
        %v376 = vpop.permute.xlu0 %375
        %378 = vset.pattern.permute.xlu0 1
        %379 = vperm.xlu0 %378, %v311
        %v380 = vpop.permute.xlu0 %379
        %382 = vset.pattern.permute.xlu0 1
        %383 = vperm.xlu0 %382, %v312
        %v384 = vpop.permute.xlu0 %383
        %386 = vset.pattern.permute.xlu0 1
        %387 = vperm.xlu0 %386, %v313
        %v388 = vpop.permute.xlu0 %387
        %390 = vset.pattern.permute.xlu0 1
        %391 = vperm.xlu0 %390, %v314
        %v392 = vpop.permute.xlu0 %391
        %v394 = vsel %vm360, %v364, %v319
        %v395 = vsel %vm361, %v364, %v319
        %v396 = vsel %vm360, %v368, %v324
        %v397 = vsel %vm361, %v368, %v324
        %v398 = vsel %vm360, %v372, %v329
        %v399 = vsel %vm361, %v372, %v329
        %v400 = vsel %vm360, %v376, %v334
        %v401 = vsel %vm361, %v376, %v334
        %v402 = vsel %vm360, %v380, %v339
        %v403 = vsel %vm361, %v380, %v339
        %v404 = vsel %vm360, %v384, %v344
        %v405 = vsel %vm361, %v384, %v344
        %v406 = vsel %vm360, %v388, %v349
        %v407 = vsel %vm361, %v388, %v349
        %v408 = vsel %vm360, %v392, %v354
        %v409 = vsel %vm361, %v392, %v354
        %vm410 = vcmp.eq.f32.partialorder %v315, 2.0
        %v411 = vsel %vm410, 1, 0
        %v412 = vperm.slane %v411, 0
        %v413 = vperm.slane %v411, 1
        %vm414 = vcmp.eq.s32.totalorder %v412, 1
        %vm415 = vcmp.eq.s32.totalorder %v413, 1
        %416 = vset.pattern.permute.xlu0 2
        %417 = vperm.xlu0 %416, %v307
        %v418 = vpop.permute.xlu0 %417
        %420 = vset.pattern.permute.xlu0 2
        %421 = vperm.xlu0 %420, %v308
        %v422 = vpop.permute.xlu0 %421
        %424 = vset.pattern.permute.xlu0 2
        %425 = vperm.xlu0 %424, %v309
        %v426 = vpop.permute.xlu0 %425
        %428 = vset.pattern.permute.xlu0 2
        %429 = vperm.xlu0 %428, %v310
        %v430 = vpop.permute.xlu0 %429
        %432 = vset.pattern.permute.xlu0 2
        %433 = vperm.xlu0 %432, %v311
        %v434 = vpop.permute.xlu0 %433
        %436 = vset.pattern.permute.xlu0 2
        %437 = vperm.xlu0 %436, %v312
        %v438 = vpop.permute.xlu0 %437
        %440 = vset.pattern.permute.xlu0 2
        %441 = vperm.xlu0 %440, %v313
        %v442 = vpop.permute.xlu0 %441
        %444 = vset.pattern.permute.xlu0 2
        %445 = vperm.xlu0 %444, %v314
        %v446 = vpop.permute.xlu0 %445
        %v448 = vsel %vm414, %v418, %v394
        %v449 = vsel %vm415, %v418, %v395
        %v450 = vsel %vm414, %v422, %v396
        %v451 = vsel %vm415, %v422, %v397
        %v452 = vsel %vm414, %v426, %v398
        %v453 = vsel %vm415, %v426, %v399
        %v454 = vsel %vm414, %v430, %v400
        %v455 = vsel %vm415, %v430, %v401
        %v456 = vsel %vm414, %v434, %v402
        %v457 = vsel %vm415, %v434, %v403
        %v458 = vsel %vm414, %v438, %v404
        %v459 = vsel %vm415, %v438, %v405
        %v460 = vsel %vm414, %v442, %v406
        %v461 = vsel %vm415, %v442, %v407
        %v462 = vsel %vm414, %v446, %v408
        %v463 = vsel %vm415, %v446, %v409
        %vm464 = vcmp.eq.f32.partialorder %v315, 3.0
        %v465 = vsel %vm464, 1, 0
        %v466 = vperm.slane %v465, 0
        %v467 = vperm.slane %v465, 1
        %vm468 = vcmp.eq.s32.totalorder %v466, 1
        %vm469 = vcmp.eq.s32.totalorder %v467, 1
        %470 = vset.pattern.permute.xlu0 3
        %471 = vperm.xlu0 %470, %v307
        %v472 = vpop.permute.xlu0 %471
        %474 = vset.pattern.permute.xlu0 3
        %475 = vperm.xlu0 %474, %v308
        %v476 = vpop.permute.xlu0 %475
        %478 = vset.pattern.permute.xlu0 3
        %479 = vperm.xlu0 %478, %v309
        %v480 = vpop.permute.xlu0 %479
        %482 = vset.pattern.permute.xlu0 3
        %483 = vperm.xlu0 %482, %v310
        %v484 = vpop.permute.xlu0 %483
        %486 = vset.pattern.permute.xlu0 3
        %487 = vperm.xlu0 %486, %v311
        %v488 = vpop.permute.xlu0 %487
        %490 = vset.pattern.permute.xlu0 3
        %491 = vperm.xlu0 %490, %v312
        %v492 = vpop.permute.xlu0 %491
        %494 = vset.pattern.permute.xlu0 3
        %495 = vperm.xlu0 %494, %v313
        %v496 = vpop.permute.xlu0 %495
        %498 = vset.pattern.permute.xlu0 3
        %499 = vperm.xlu0 %498, %v314
        %v500 = vpop.permute.xlu0 %499
        %v502 = vsel %vm468, %v472, %v448
        %v503 = vsel %vm469, %v472, %v449
        %v504 = vsel %vm468, %v476, %v450
        %v505 = vsel %vm469, %v476, %v451
        %v506 = vsel %vm468, %v480, %v452
        %v507 = vsel %vm469, %v480, %v453
        %v508 = vsel %vm468, %v484, %v454
        %v509 = vsel %vm469, %v484, %v455
        %v510 = vsel %vm468, %v488, %v456
        %v511 = vsel %vm469, %v488, %v457
        %v512 = vsel %vm468, %v492, %v458
        %v513 = vsel %vm469, %v492, %v459
        %v514 = vsel %vm468, %v496, %v460
        %v515 = vsel %vm469, %v496, %v461
        %v516 = vsel %vm468, %v500, %v462
        %v517 = vsel %vm469, %v500, %v463
        %vm518 = vcmp.eq.f32.partialorder %v315, 4.0
        %v519 = vsel %vm518, 1, 0
        %v520 = vperm.slane %v519, 0
        %v521 = vperm.slane %v519, 1
        %vm522 = vcmp.eq.s32.totalorder %v520, 1
        %vm523 = vcmp.eq.s32.totalorder %v521, 1
        %524 = vset.pattern.permute.xlu0 4
        %525 = vperm.xlu0 %524, %v307
        %v526 = vpop.permute.xlu0 %525
        %528 = vset.pattern.permute.xlu0 4
        %529 = vperm.xlu0 %528, %v308
        %v530 = vpop.permute.xlu0 %529
        %532 = vset.pattern.permute.xlu0 4
        %533 = vperm.xlu0 %532, %v309
        %v534 = vpop.permute.xlu0 %533
        %536 = vset.pattern.permute.xlu0 4
        %537 = vperm.xlu0 %536, %v310
        %v538 = vpop.permute.xlu0 %537
        %540 = vset.pattern.permute.xlu0 4
        %541 = vperm.xlu0 %540, %v311
        %v542 = vpop.permute.xlu0 %541
        %544 = vset.pattern.permute.xlu0 4
        %545 = vperm.xlu0 %544, %v312
        %v546 = vpop.permute.xlu0 %545
        %548 = vset.pattern.permute.xlu0 4
        %549 = vperm.xlu0 %548, %v313
        %v550 = vpop.permute.xlu0 %549
        %552 = vset.pattern.permute.xlu0 4
        %553 = vperm.xlu0 %552, %v314
        %v554 = vpop.permute.xlu0 %553
        %v556 = vsel %vm522, %v526, %v502
        %v557 = vsel %vm523, %v526, %v503
        %v558 = vsel %vm522, %v530, %v504
        %v559 = vsel %vm523, %v530, %v505
        %v560 = vsel %vm522, %v534, %v506
        %v561 = vsel %vm523, %v534, %v507
        %v562 = vsel %vm522, %v538, %v508
        %v563 = vsel %vm523, %v538, %v509
        %v564 = vsel %vm522, %v542, %v510
        %v565 = vsel %vm523, %v542, %v511
        %v566 = vsel %vm522, %v546, %v512
        %v567 = vsel %vm523, %v546, %v513
        %v568 = vsel %vm522, %v550, %v514
        %v569 = vsel %vm523, %v550, %v515
        %v570 = vsel %vm522, %v554, %v516
        %v571 = vsel %vm523, %v554, %v517
        %vm572 = vcmp.eq.f32.partialorder %v315, 5.0
        %v573 = vsel %vm572, 1, 0
        %v574 = vperm.slane %v573, 0
        %v575 = vperm.slane %v573, 1
        %vm576 = vcmp.eq.s32.totalorder %v574, 1
        %vm577 = vcmp.eq.s32.totalorder %v575, 1
        %578 = vset.pattern.permute.xlu0 5
        %579 = vperm.xlu0 %578, %v307
        %v580 = vpop.permute.xlu0 %579
        %582 = vset.pattern.permute.xlu0 5
        %583 = vperm.xlu0 %582, %v308
        %v584 = vpop.permute.xlu0 %583
        %586 = vset.pattern.permute.xlu0 5
        %587 = vperm.xlu0 %586, %v309
        %v588 = vpop.permute.xlu0 %587
        %590 = vset.pattern.permute.xlu0 5
        %591 = vperm.xlu0 %590, %v310
        %v592 = vpop.permute.xlu0 %591
        %594 = vset.pattern.permute.xlu0 5
        %595 = vperm.xlu0 %594, %v311
        %v596 = vpop.permute.xlu0 %595
        %598 = vset.pattern.permute.xlu0 5
        %599 = vperm.xlu0 %598, %v312
        %v600 = vpop.permute.xlu0 %599
        %602 = vset.pattern.permute.xlu0 5
        %603 = vperm.xlu0 %602, %v313
        %v604 = vpop.permute.xlu0 %603
        %606 = vset.pattern.permute.xlu0 5
        %607 = vperm.xlu0 %606, %v314
        %v608 = vpop.permute.xlu0 %607
        %v610 = vsel %vm576, %v580, %v556
        %v611 = vsel %vm577, %v580, %v557
        %v612 = vsel %vm576, %v584, %v558
        %v613 = vsel %vm577, %v584, %v559
        %v614 = vsel %vm576, %v588, %v560
        %v615 = vsel %vm577, %v588, %v561
        %v616 = vsel %vm576, %v592, %v562
        %v617 = vsel %vm577, %v592, %v563
        %v618 = vsel %vm576, %v596, %v564
        %v619 = vsel %vm577, %v596, %v565
        %v620 = vsel %vm576, %v600, %v566
        %v621 = vsel %vm577, %v600, %v567
        %v622 = vsel %vm576, %v604, %v568
        %v623 = vsel %vm577, %v604, %v569
        %v624 = vsel %vm576, %v608, %v570
        %v625 = vsel %vm577, %v608, %v571
        %vm626 = vcmp.eq.f32.partialorder %v315, 6.0
        %v627 = vsel %vm626, 1, 0
        %v628 = vperm.slane %v627, 0
        %v629 = vperm.slane %v627, 1
        %vm630 = vcmp.eq.s32.totalorder %v628, 1
        %vm631 = vcmp.eq.s32.totalorder %v629, 1
        %632 = vset.pattern.permute.xlu0 6
        %633 = vperm.xlu0 %632, %v307
        %v634 = vpop.permute.xlu0 %633
        %636 = vset.pattern.permute.xlu0 6
        %637 = vperm.xlu0 %636, %v308
        %v638 = vpop.permute.xlu0 %637
        %640 = vset.pattern.permute.xlu0 6
        %641 = vperm.xlu0 %640, %v309
        %v642 = vpop.permute.xlu0 %641
        %644 = vset.pattern.permute.xlu0 6
        %645 = vperm.xlu0 %644, %v310
        %v646 = vpop.permute.xlu0 %645
        %648 = vset.pattern.permute.xlu0 6
        %649 = vperm.xlu0 %648, %v311
        %v650 = vpop.permute.xlu0 %649
        %652 = vset.pattern.permute.xlu0 6
        %653 = vperm.xlu0 %652, %v312
        %v654 = vpop.permute.xlu0 %653
        %656 = vset.pattern.permute.xlu0 6
        %657 = vperm.xlu0 %656, %v313
        %v658 = vpop.permute.xlu0 %657
        %660 = vset.pattern.permute.xlu0 6
        %661 = vperm.xlu0 %660, %v314
        %v662 = vpop.permute.xlu0 %661
        %v664 = vsel %vm630, %v634, %v610
        %v665 = vsel %vm631, %v634, %v611
        %v666 = vsel %vm630, %v638, %v612
        %v667 = vsel %vm631, %v638, %v613
        %v668 = vsel %vm630, %v642, %v614
        %v669 = vsel %vm631, %v642, %v615
        %v670 = vsel %vm630, %v646, %v616
        %v671 = vsel %vm631, %v646, %v617
        %v672 = vsel %vm630, %v650, %v618
        %v673 = vsel %vm631, %v650, %v619
        %v674 = vsel %vm630, %v654, %v620
        %v675 = vsel %vm631, %v654, %v621
        %v676 = vsel %vm630, %v658, %v622
        %v677 = vsel %vm631, %v658, %v623
        %v678 = vsel %vm630, %v662, %v624
        %v679 = vsel %vm631, %v662, %v625
        %vm680 = vcmp.eq.f32.partialorder %v315, 7.0
        %v681 = vsel %vm680, 1, 0
        %v682 = vperm.slane %v681, 0
        %v683 = vperm.slane %v681, 1
        %vm684 = vcmp.eq.s32.totalorder %v682, 1
        %vm685 = vcmp.eq.s32.totalorder %v683, 1
        %686 = vset.pattern.permute.xlu0 7
        %687 = vperm.xlu0 %686, %v307
        %v688 = vpop.permute.xlu0 %687
        %690 = vset.pattern.permute.xlu0 7
        %691 = vperm.xlu0 %690, %v308
        %v692 = vpop.permute.xlu0 %691
        %694 = vset.pattern.permute.xlu0 7
        %695 = vperm.xlu0 %694, %v309
        %v696 = vpop.permute.xlu0 %695
        %698 = vset.pattern.permute.xlu0 7
        %699 = vperm.xlu0 %698, %v310
        %v700 = vpop.permute.xlu0 %699
        %702 = vset.pattern.permute.xlu0 7
        %703 = vperm.xlu0 %702, %v311
        %v704 = vpop.permute.xlu0 %703
        %706 = vset.pattern.permute.xlu0 7
        %707 = vperm.xlu0 %706, %v312
        %v708 = vpop.permute.xlu0 %707
        %710 = vset.pattern.permute.xlu0 7
        %711 = vperm.xlu0 %710, %v313
        %v712 = vpop.permute.xlu0 %711
        %714 = vset.pattern.permute.xlu0 7
        %715 = vperm.xlu0 %714, %v314
        %v716 = vpop.permute.xlu0 %715
        %v718 = vsel %vm684, %v688, %v664
        %v719 = vsel %vm685, %v688, %v665
        %v720 = vsel %vm684, %v692, %v666
        %v721 = vsel %vm685, %v692, %v667
        %v722 = vsel %vm684, %v696, %v668
        %v723 = vsel %vm685, %v696, %v669
        %v724 = vsel %vm684, %v700, %v670
        %v725 = vsel %vm685, %v700, %v671
        %v726 = vsel %vm684, %v704, %v672
        %v727 = vsel %vm685, %v704, %v673
        %v728 = vsel %vm684, %v708, %v674
        %v729 = vsel %vm685, %v708, %v675
        %v730 = vsel %vm684, %v712, %v676
        %v731 = vsel %vm685, %v712, %v677
        %v732 = vsel %vm684, %v716, %v678
        %v733 = vsel %vm685, %v716, %v679
        %vm734 = vcmp.eq.f32.partialorder %v315, 8.0
        %v735 = vsel %vm734, 1, 0
        %v736 = vperm.slane %v735, 0
        %v737 = vperm.slane %v735, 1
        %vm738 = vcmp.eq.s32.totalorder %v736, 1
        %vm739 = vcmp.eq.s32.totalorder %v737, 1
        %740 = vset.pattern.permute.xlu0 8
        %741 = vperm.xlu0 %740, %v307
        %v742 = vpop.permute.xlu0 %741
        %744 = vset.pattern.permute.xlu0 8
        %745 = vperm.xlu0 %744, %v308
        %v746 = vpop.permute.xlu0 %745
        %748 = vset.pattern.permute.xlu0 8
        %749 = vperm.xlu0 %748, %v309
        %v750 = vpop.permute.xlu0 %749
        %752 = vset.pattern.permute.xlu0 8
        %753 = vperm.xlu0 %752, %v310
        %v754 = vpop.permute.xlu0 %753
        %756 = vset.pattern.permute.xlu0 8
        %757 = vperm.xlu0 %756, %v311
        %v758 = vpop.permute.xlu0 %757
        %760 = vset.pattern.permute.xlu0 8
        %761 = vperm.xlu0 %760, %v312
        %v762 = vpop.permute.xlu0 %761
        %764 = vset.pattern.permute.xlu0 8
        %765 = vperm.xlu0 %764, %v313
        %v766 = vpop.permute.xlu0 %765
        %768 = vset.pattern.permute.xlu0 8
        %769 = vperm.xlu0 %768, %v314
        %v770 = vpop.permute.xlu0 %769
        %v772 = vsel %vm738, %v742, %v718
        %v773 = vsel %vm739, %v742, %v719
        %v774 = vsel %vm738, %v746, %v720
        %v775 = vsel %vm739, %v746, %v721
        %v776 = vsel %vm738, %v750, %v722
        %v777 = vsel %vm739, %v750, %v723
        %v778 = vsel %vm738, %v754, %v724
        %v779 = vsel %vm739, %v754, %v725
        %v780 = vsel %vm738, %v758, %v726
        %v781 = vsel %vm739, %v758, %v727
        %v782 = vsel %vm738, %v762, %v728
        %v783 = vsel %vm739, %v762, %v729
        %v784 = vsel %vm738, %v766, %v730
        %v785 = vsel %vm739, %v766, %v731
        %v786 = vsel %vm738, %v770, %v732
        %v787 = vsel %vm739, %v770, %v733
        %vm788 = vcmp.eq.f32.partialorder %v315, 9.0
        %v789 = vsel %vm788, 1, 0
        %v790 = vperm.slane %v789, 0
        %v791 = vperm.slane %v789, 1
        %vm792 = vcmp.eq.s32.totalorder %v790, 1
        %vm793 = vcmp.eq.s32.totalorder %v791, 1
        %794 = vset.pattern.permute.xlu0 9
        %795 = vperm.xlu0 %794, %v307
        %v796 = vpop.permute.xlu0 %795
        %798 = vset.pattern.permute.xlu0 9
        %799 = vperm.xlu0 %798, %v308
        %v800 = vpop.permute.xlu0 %799
        %802 = vset.pattern.permute.xlu0 9
        %803 = vperm.xlu0 %802, %v309
        %v804 = vpop.permute.xlu0 %803
        %806 = vset.pattern.permute.xlu0 9
        %807 = vperm.xlu0 %806, %v310
        %v808 = vpop.permute.xlu0 %807
        %810 = vset.pattern.permute.xlu0 9
        %811 = vperm.xlu0 %810, %v311
        %v812 = vpop.permute.xlu0 %811
        %814 = vset.pattern.permute.xlu0 9
        %815 = vperm.xlu0 %814, %v312
        %v816 = vpop.permute.xlu0 %815
        %818 = vset.pattern.permute.xlu0 9
        %819 = vperm.xlu0 %818, %v313
        %v820 = vpop.permute.xlu0 %819
        %822 = vset.pattern.permute.xlu0 9
        %823 = vperm.xlu0 %822, %v314
        %v824 = vpop.permute.xlu0 %823
        %v826 = vsel %vm792, %v796, %v772
        %v827 = vsel %vm793, %v796, %v773
        %v828 = vsel %vm792, %v800, %v774
        %v829 = vsel %vm793, %v800, %v775
        %v830 = vsel %vm792, %v804, %v776
        %v831 = vsel %vm793, %v804, %v777
        %v832 = vsel %vm792, %v808, %v778
        %v833 = vsel %vm793, %v808, %v779
        %v834 = vsel %vm792, %v812, %v780
        %v835 = vsel %vm793, %v812, %v781
        %v836 = vsel %vm792, %v816, %v782
        %v837 = vsel %vm793, %v816, %v783
        %v838 = vsel %vm792, %v820, %v784
        %v839 = vsel %vm793, %v820, %v785
        %v840 = vsel %vm792, %v824, %v786
        %v841 = vsel %vm793, %v824, %v787
        %vm842 = vcmp.eq.f32.partialorder %v315, 10.0
        %v843 = vsel %vm842, 1, 0
        %v844 = vperm.slane %v843, 0
        %v845 = vperm.slane %v843, 1
        %vm846 = vcmp.eq.s32.totalorder %v844, 1
        %vm847 = vcmp.eq.s32.totalorder %v845, 1
        %848 = vset.pattern.permute.xlu0 10
        %849 = vperm.xlu0 %848, %v307
        %v850 = vpop.permute.xlu0 %849
        %852 = vset.pattern.permute.xlu0 10
        %853 = vperm.xlu0 %852, %v308
        %v854 = vpop.permute.xlu0 %853
        %856 = vset.pattern.permute.xlu0 10
        %857 = vperm.xlu0 %856, %v309
        %v858 = vpop.permute.xlu0 %857
        %860 = vset.pattern.permute.xlu0 10
        %861 = vperm.xlu0 %860, %v310
        %v862 = vpop.permute.xlu0 %861
        %864 = vset.pattern.permute.xlu0 10
        %865 = vperm.xlu0 %864, %v311
        %v866 = vpop.permute.xlu0 %865
        %868 = vset.pattern.permute.xlu0 10
        %869 = vperm.xlu0 %868, %v312
        %v870 = vpop.permute.xlu0 %869
        %872 = vset.pattern.permute.xlu0 10
        %873 = vperm.xlu0 %872, %v313
        %v874 = vpop.permute.xlu0 %873
        %876 = vset.pattern.permute.xlu0 10
        %877 = vperm.xlu0 %876, %v314
        %v878 = vpop.permute.xlu0 %877
        %v880 = vsel %vm846, %v850, %v826
        %v881 = vsel %vm847, %v850, %v827
        %v882 = vsel %vm846, %v854, %v828
        %v883 = vsel %vm847, %v854, %v829
        %v884 = vsel %vm846, %v858, %v830
        %v885 = vsel %vm847, %v858, %v831
        %v886 = vsel %vm846, %v862, %v832
        %v887 = vsel %vm847, %v862, %v833
        %v888 = vsel %vm846, %v866, %v834
        %v889 = vsel %vm847, %v866, %v835
        %v890 = vsel %vm846, %v870, %v836
        %v891 = vsel %vm847, %v870, %v837
        %v892 = vsel %vm846, %v874, %v838
        %v893 = vsel %vm847, %v874, %v839
        %v894 = vsel %vm846, %v878, %v840
        %v895 = vsel %vm847, %v878, %v841
        %vm896 = vcmp.eq.f32.partialorder %v315, 11.0
        %v897 = vsel %vm896, 1, 0
        %v898 = vperm.slane %v897, 0
        %v899 = vperm.slane %v897, 1
        %vm900 = vcmp.eq.s32.totalorder %v898, 1
        %vm901 = vcmp.eq.s32.totalorder %v899, 1
        %902 = vset.pattern.permute.xlu0 11
        %903 = vperm.xlu0 %902, %v307
        %v904 = vpop.permute.xlu0 %903
        %906 = vset.pattern.permute.xlu0 11
        %907 = vperm.xlu0 %906, %v308
        %v908 = vpop.permute.xlu0 %907
        %910 = vset.pattern.permute.xlu0 11
        %911 = vperm.xlu0 %910, %v309
        %v912 = vpop.permute.xlu0 %911
        %914 = vset.pattern.permute.xlu0 11
        %915 = vperm.xlu0 %914, %v310
        %v916 = vpop.permute.xlu0 %915
        %918 = vset.pattern.permute.xlu0 11
        %919 = vperm.xlu0 %918, %v311
        %v920 = vpop.permute.xlu0 %919
        %922 = vset.pattern.permute.xlu0 11
        %923 = vperm.xlu0 %922, %v312
        %v924 = vpop.permute.xlu0 %923
        %926 = vset.pattern.permute.xlu0 11
        %927 = vperm.xlu0 %926, %v313
        %v928 = vpop.permute.xlu0 %927
        %930 = vset.pattern.permute.xlu0 11
        %931 = vperm.xlu0 %930, %v314
        %v932 = vpop.permute.xlu0 %931
        %v934 = vsel %vm900, %v904, %v880
        %v935 = vsel %vm901, %v904, %v881
        %v936 = vsel %vm900, %v908, %v882
        %v937 = vsel %vm901, %v908, %v883
        %v938 = vsel %vm900, %v912, %v884
        %v939 = vsel %vm901, %v912, %v885
        %v940 = vsel %vm900, %v916, %v886
        %v941 = vsel %vm901, %v916, %v887
        %v942 = vsel %vm900, %v920, %v888
        %v943 = vsel %vm901, %v920, %v889
        %v944 = vsel %vm900, %v924, %v890
        %v945 = vsel %vm901, %v924, %v891
        %v946 = vsel %vm900, %v928, %v892
        %v947 = vsel %vm901, %v928, %v893
        %v948 = vsel %vm900, %v932, %v894
        %v949 = vsel %vm901, %v932, %v895
        %v950 = vld [vmem:[%s2] sm:$0x3]
        %v952 = vperm.slane %v950, 0
        %v953 = vperm.slane %v950, 1
        %v956 = vsub.f32 %v934, %v952
        %v957 = vsub.f32 %v935, %v953
        %v958 = vsub.f32 %v936, %v952
        %v959 = vsub.f32 %v937, %v953
        %v960 = vsub.f32 %v938, %v952
        %v961 = vsub.f32 %v939, %v953
        %v962 = vsub.f32 %v940, %v952
        %v963 = vsub.f32 %v941, %v953
        %v964 = vsub.f32 %v942, %v952
        %v965 = vsub.f32 %v943, %v953
        %v966 = vsub.f32 %v944, %v952
        %v967 = vsub.f32 %v945, %v953
        %v968 = vsub.f32 %v946, %v952
        %v969 = vsub.f32 %v947, %v953
        %v970 = vsub.f32 %v948, %v952
        %v971 = vsub.f32 %v949, %v953
        %v972 = vmul.f32 %v956, -1.7578123
        %v973 = vmul.f32 %v957, -1.7578123
        %v974 = vmul.f32 %v958, -1.7578123
        %v975 = vmul.f32 %v959, -1.7578123
        %v976 = vmul.f32 %v960, -1.7578123
        %v977 = vmul.f32 %v961, -1.7578123
        %v978 = vmul.f32 %v962, -1.7578123
        %v979 = vmul.f32 %v963, -1.7578123
        %v980 = vmul.f32 %v964, -1.7578123
        %v981 = vmul.f32 %v965, -1.7578123
        %v982 = vmul.f32 %v966, -1.7578123
        %v983 = vmul.f32 %v967, -1.7578123
        %v984 = vmul.f32 %v968, -1.7578123
        %v985 = vmul.f32 %v969, -1.7578123
        %v986 = vmul.f32 %v970, -1.7578123
        %v987 = vmul.f32 %v971, -1.7578123
        %v988 = vmul.f32 %v972, %v956
        %v989 = vmul.f32 %v973, %v957
        %v990 = vmul.f32 %v974, %v958
        %v991 = vmul.f32 %v975, %v959
        %v992 = vmul.f32 %v976, %v960
        %v993 = vmul.f32 %v977, %v961
        %v994 = vmul.f32 %v978, %v962
        %v995 = vmul.f32 %v979, %v963
        %v996 = vmul.f32 %v980, %v964
        %v997 = vmul.f32 %v981, %v965
        %v998 = vmul.f32 %v982, %v966
        %v999 = vmul.f32 %v983, %v967
        %v1000 = vmul.f32 %v984, %v968
        %v1001 = vmul.f32 %v985, %v969
        %v1002 = vmul.f32 %v986, %v970
        %v1003 = vmul.f32 %v987, %v971
        %v1004 = vmul.f32 %v988, 1.442695
        %v1005 = vpow.pop %v1004
        %v1006 = vmul.f32 %v989, 1.442695
        %v1007 = vpow.pop %v1006
        %v1008 = vmul.f32 %v990, 1.442695
        %v1009 = vpow.pop %v1008
        %v1010 = vmul.f32 %v991, 1.442695
        %v1011 = vpow.pop %v1010
        %v1012 = vmul.f32 %v992, 1.442695
        %v1013 = vpow.pop %v1012
        %v1014 = vmul.f32 %v993, 1.442695
        %v1015 = vpow.pop %v1014
        %v1016 = vmul.f32 %v994, 1.442695
        %v1017 = vpow.pop %v1016
        %v1018 = vmul.f32 %v995, 1.442695
        %v1019 = vpow.pop %v1018
        %v1020 = vmul.f32 %v996, 1.442695
        %v1021 = vpow.pop %v1020
        %v1022 = vmul.f32 %v997, 1.442695
        %v1023 = vpow.pop %v1022
        %v1024 = vmul.f32 %v998, 1.442695
        %v1025 = vpow.pop %v1024
        %v1026 = vmul.f32 %v999, 1.442695
        %v1027 = vpow.pop %v1026
        %v1028 = vmul.f32 %v1000, 1.442695
        %v1029 = vpow.pop %v1028
        %v1030 = vmul.f32 %v1001, 1.442695
        %v1031 = vpow.pop %v1030
        %v1032 = vmul.f32 %v1002, 1.442695
        %v1033 = vpow.pop %v1032
        %v1034 = vmul.f32 %v1003, 1.442695
        %v1035 = vpow.pop %v1034
        %vm1036 = vcmp.eq.f32.partialorder %v956, 0.0
        %vm1037 = vcmp.eq.f32.partialorder %v957, 0.0
        %vm1038 = vcmp.eq.f32.partialorder %v958, 0.0
        %vm1039 = vcmp.eq.f32.partialorder %v959, 0.0
        %vm1040 = vcmp.eq.f32.partialorder %v960, 0.0
        %vm1041 = vcmp.eq.f32.partialorder %v961, 0.0
        %vm1042 = vcmp.eq.f32.partialorder %v962, 0.0
        %vm1043 = vcmp.eq.f32.partialorder %v963, 0.0
        %vm1044 = vcmp.eq.f32.partialorder %v964, 0.0
        %vm1045 = vcmp.eq.f32.partialorder %v965, 0.0
        %vm1046 = vcmp.eq.f32.partialorder %v966, 0.0
        %vm1047 = vcmp.eq.f32.partialorder %v967, 0.0
        %vm1048 = vcmp.eq.f32.partialorder %v968, 0.0
        %vm1049 = vcmp.eq.f32.partialorder %v969, 0.0
        %vm1050 = vcmp.eq.f32.partialorder %v970, 0.0
        %vm1051 = vcmp.eq.f32.partialorder %v971, 0.0
        %v1052 = vsel %vm1036, 1, 0
        %v1053 = vsel %vm1037, 1, 0
        %v1054 = vsel %vm1038, 1, 0
        %v1055 = vsel %vm1039, 1, 0
        %v1056 = vsel %vm1040, 1, 0
        %v1057 = vsel %vm1041, 1, 0
        %v1058 = vsel %vm1042, 1, 0
        %v1059 = vsel %vm1043, 1, 0
        %v1060 = vsel %vm1044, 1, 0
        %v1061 = vsel %vm1045, 1, 0
        %v1062 = vsel %vm1046, 1, 0
        %v1063 = vsel %vm1047, 1, 0
        %v1064 = vsel %vm1048, 1, 0
        %v1065 = vsel %vm1049, 1, 0
        %v1066 = vsel %vm1050, 1, 0
        %v1067 = vsel %vm1051, 1, 0
        %v1068 = vcvt.s32.f32 %v1052
        %v1069 = vcvt.s32.f32 %v1053
        %v1070 = vcvt.s32.f32 %v1054
        %v1071 = vcvt.s32.f32 %v1055
        %v1072 = vcvt.s32.f32 %v1056
        %v1073 = vcvt.s32.f32 %v1057
        %v1074 = vcvt.s32.f32 %v1058
        %v1075 = vcvt.s32.f32 %v1059
        %v1076 = vcvt.s32.f32 %v1060
        %v1077 = vcvt.s32.f32 %v1061
        %v1078 = vcvt.s32.f32 %v1062
        %v1079 = vcvt.s32.f32 %v1063
        %v1080 = vcvt.s32.f32 %v1064
        %v1081 = vcvt.s32.f32 %v1065
        %v1082 = vcvt.s32.f32 %v1066
        %v1083 = vcvt.s32.f32 %v1067
        %v1084 = vld [vmem:[%s3] sm:$0x3]
        %vm1085 = vcmp.ne.f32.partialorder %v1084, 0.0
        %v1086 = vsel %vm1085, 1, 0
        %v1087 = vperm.slane %v1086, 0
        %v1088 = vperm.slane %v1086, 1
        %vm1089 = vcmp.eq.s32.totalorder %v1087, 1
        %vm1090 = vcmp.eq.s32.totalorder %v1088, 1
        %v1091 = vsel %vm1089, %v1005, %v1068
        %v1092 = vsel %vm1090, %v1007, %v1069
        %v1093 = vsel %vm1089, %v1009, %v1070
        %v1094 = vsel %vm1090, %v1011, %v1071
        %v1095 = vsel %vm1089, %v1013, %v1072
        %v1096 = vsel %vm1090, %v1015, %v1073
        %v1097 = vsel %vm1089, %v1017, %v1074
        %v1098 = vsel %vm1090, %v1019, %v1075
        %v1099 = vsel %vm1089, %v1021, %v1076
        %v1100 = vsel %vm1090, %v1023, %v1077
        %v1101 = vsel %vm1089, %v1025, %v1078
        %v1102 = vsel %vm1090, %v1027, %v1079
        %v1103 = vsel %vm1089, %v1029, %v1080
        %v1104 = vsel %vm1090, %v1031, %v1081
        %v1105 = vsel %vm1089, %v1033, %v1082
        %v1106 = vsel %vm1090, %v1035, %v1083
        %v1107 = vld [vmem:[%s4] sm:$0xff]
        %v1108 = vld [vmem:[%s4 + $0x8] sm:$0xff]
        %v1109 = vld [vmem:[%s4 + $0x10] sm:$0xff]
        %v1110 = vld [vmem:[%s4 + $0x18] sm:$0xff]
        %v1111 = vld [vmem:[%s4 + $0x20] sm:$0xff]
        %v1112 = vld [vmem:[%s4 + $0x28] sm:$0xff]
        %v1113 = vld [vmem:[%s4 + $0x30] sm:$0xff]
        %v1114 = vld [vmem:[%s4 + $0x38] sm:$0xff]
        %v1115 = vld [vmem:[%s4 + $0x40] sm:$0xff]
        %v1116 = vld [vmem:[%s4 + $0x48] sm:$0xff]
        %v1117 = vld [vmem:[%s4 + $0x50] sm:$0xff]
        %v1118 = vld [vmem:[%s4 + $0x58] sm:$0xff]
        %v1119 = vld [vmem:[%s4 + $0x60] sm:$0xff]
        %v1120 = vld [vmem:[%s4 + $0x68] sm:$0xff]
        %v1121 = vld [vmem:[%s4 + $0x70] sm:$0xff]
        %v1122 = vld [vmem:[%s4 + $0x78] sm:$0xff]
        %v1123 = vld [vmem:[%s4 + $0x80] sm:$0xff]
        %v1124 = vld [vmem:[%s4 + $0x88] sm:$0xff]
        %v1125 = vld [vmem:[%s5] sm:$0x1]
        %v1127 = vperm.slane %v1125, 0
        %vm1129 = vcmask 130048
        %v1131 = vsel %vm1129, %v1092, 0
        %v1134 = vsel %vm1129, %v1094, 0
        %v1137 = vsel %vm1129, %v1096, 0
        %v1140 = vsel %vm1129, %v1098, 0
        %v1143 = vsel %vm1129, %v1100, 0
        %v1146 = vsel %vm1129, %v1102, 0
        %v1149 = vsel %vm1129, %v1104, 0
        %v1152 = vsel %vm1129, %v1106, 0
        %1154 = vmatpush.msra.mxu0 %v1122
        %1155 = vmatpush.msra.mxu0 %v1121
        %1156 = vmatpush.msra.mxu0 %v1120
        %1157 = vmatpush.msra.mxu0 %v1119
        %1158 = vmatpush.msra.mxu0 %v1118
        %1159 = vmatpush.msra.mxu0 %v1117
        %1160 = vmatpush.msra.mxu0 %v1116
        %1161 = vmatpush.msra.mxu0 %v1115
        %1162 = vmatpush.msra.mxu0 %v1114
        %1163 = vmatpush.msra.mxu0 %v1113
        %1164 = vmatpush.msra.mxu0 %v1112
        %1165 = vmatpush.msra.mxu0 %v1111
        %1166 = vmatpush.msra.mxu0 %v1110
        %1167 = vmatpush.msra.mxu0 %v1109
        %1168 = vmatpush.msra.mxu0 %v1108
        %1169 = vmatpush.msra.mxu0 %v1107
        %1170 = vmatmul.f32.gmra.mxu0 %v1091
        %v1171 = vpop.f32.mrf.mxu0
        %v1172 = vadd.f32 %v1127, %v1171
        %1173 = vmatmul.f32.gmra.mxu0 %v1093
        %v1174 = vpop.f32.mrf.mxu0
        %v1175 = vadd.f32 %v1127, %v1174
        %1176 = vmatmul.f32.gmra.mxu0 %v1095
        %v1177 = vpop.f32.mrf.mxu0
        %v1178 = vadd.f32 %v1127, %v1177
        %1179 = vmatmul.f32.gmra.mxu0 %v1097
        %v1180 = vpop.f32.mrf.mxu0
        %v1181 = vadd.f32 %v1127, %v1180
        %1182 = vmatmul.f32.gmra.mxu0 %v1099
        %v1183 = vpop.f32.mrf.mxu0
        %v1184 = vadd.f32 %v1127, %v1183
        %1185 = vmatmul.f32.gmra.mxu0 %v1101
        %v1186 = vpop.f32.mrf.mxu0
        %v1187 = vadd.f32 %v1127, %v1186
        %1188 = vmatmul.f32.gmra.mxu0 %v1103
        %v1189 = vpop.f32.mrf.mxu0
        %v1190 = vadd.f32 %v1127, %v1189
        %1191 = vmatmul.f32.gmra.mxu0 %v1105
        %v1192 = vpop.f32.mrf.mxu0
        %v1193 = vadd.f32 %v1127, %v1192
        %1194 = vdwg.mxu0
        %1195 = vmatpush.msra.mxu0 0.0
        %1196 = vmatpush.msra.mxu0 0.0
        %1197 = vmatpush.msra.mxu0 0.0
        %1198 = vmatpush.msra.mxu0 0.0
        %1199 = vmatpush.msra.mxu0 0.0
        %1200 = vmatpush.msra.mxu0 0.0
        %1201 = vmatpush.msra.mxu0 0.0
        %1202 = vmatpush.msra.mxu0 0.0
        %1203 = vmatpush.msra.mxu0 0.0
        %1204 = vmatpush.msra.mxu0 0.0
        %1205 = vmatpush.msra.mxu0 0.0
        %1206 = vmatpush.msra.mxu0 0.0
        %1207 = vmatpush.msra.mxu0 0.0
        %1208 = vmatpush.msra.mxu0 0.0
        %1209 = vmatpush.msra.mxu0 %v1124
        %1210 = vmatpush.msra.mxu0 %v1123
        %1211 = vmatmul.f32.gmra.mxu0 %v1131
        %v1212 = vpop.f32.mrf.mxu0
        %v1213 = vadd.f32 %v1172, %v1212
        %1214 = vmatmul.f32.gmra.mxu0 %v1134
        %v1215 = vpop.f32.mrf.mxu0
        %v1216 = vadd.f32 %v1175, %v1215
        %1217 = vmatmul.f32.gmra.mxu0 %v1137
        %v1218 = vpop.f32.mrf.mxu0
        %v1219 = vadd.f32 %v1178, %v1218
        %1220 = vmatmul.f32.gmra.mxu0 %v1140
        %v1221 = vpop.f32.mrf.mxu0
        %v1222 = vadd.f32 %v1181, %v1221
        %1223 = vmatmul.f32.gmra.mxu0 %v1143
        %v1224 = vpop.f32.mrf.mxu0
        %v1225 = vadd.f32 %v1184, %v1224
        %1226 = vmatmul.f32.gmra.mxu0 %v1146
        %v1227 = vpop.f32.mrf.mxu0
        %v1228 = vadd.f32 %v1187, %v1227
        %1229 = vmatmul.f32.gmra.mxu0 %v1149
        %v1230 = vpop.f32.mrf.mxu0
        %v1231 = vadd.f32 %v1190, %v1230
        %1232 = vmatmul.f32.gmra.mxu0 %v1152
        %v1233 = vpop.f32.mrf.mxu0
        %v1234 = vadd.f32 %v1193, %v1233
        %1235 = vdwg.mxu0
        %v1236 = vxor.u32 %v1213, 2147483648
        %v1237 = vxor.u32 %v1216, 2147483648
        %v1238 = vxor.u32 %v1219, 2147483648
        %v1239 = vxor.u32 %v1222, 2147483648
        %v1240 = vxor.u32 %v1225, 2147483648
        %v1241 = vxor.u32 %v1228, 2147483648
        %v1242 = vxor.u32 %v1231, 2147483648
        %v1243 = vxor.u32 %v1234, 2147483648
        %v1244 = vmul.f32 %v1236, 1.442695
        %v1245 = vpow.pop %v1244
        %v1246 = vmul.f32 %v1237, 1.442695
        %v1247 = vpow.pop %v1246
        %v1248 = vmul.f32 %v1238, 1.442695
        %v1249 = vpow.pop %v1248
        %v1250 = vmul.f32 %v1239, 1.442695
        %v1251 = vpow.pop %v1250
        %v1252 = vmul.f32 %v1240, 1.442695
        %v1253 = vpow.pop %v1252
        %v1254 = vmul.f32 %v1241, 1.442695
        %v1255 = vpow.pop %v1254
        %v1256 = vmul.f32 %v1242, 1.442695
        %v1257 = vpow.pop %v1256
        %v1258 = vmul.f32 %v1243, 1.442695
        %v1259 = vpow.pop %v1258
        %v1260 = vadd.f32 %v1245, 1.0
        %v1261 = vadd.f32 %v1247, 1.0
        %v1262 = vadd.f32 %v1249, 1.0
        %v1263 = vadd.f32 %v1251, 1.0
        %v1264 = vadd.f32 %v1253, 1.0
        %v1265 = vadd.f32 %v1255, 1.0
        %v1266 = vadd.f32 %v1257, 1.0
        %v1267 = vadd.f32 %v1259, 1.0
        %v1268 = vrcp.pop %v1260
        %v1269 = vmul.f32 %v1260, %v1268
        %v1270 = vsub.f32 1.0, %v1269
        %v1271 = vmul.f32 %v1268, %v1270
        %v1272 = vadd.f32 %v1268, %v1271
        %vm1273 = vweird.f32 %v1260
        %vm1274 = vweird.f32 %v1268
        %vm1275 = vmor %vm1273, %vm1274
        %v1276 = vsel %vm1275, %v1268, %v1272
        %v1277 = vand.u32 2147483647, %v1260
        %vm1278 = vcmp.eq.f32.partialorder %v1277, 8.507059e+37
        %v1279 = vand.u32 %v1260, 2147483648
        %v1280 = vor.u32 1.1754944e-38, %v1279
        %v1281 = vsel %vm1278, %v1280, %v1276
        %v1282 = vmul.f32 1.0, %v1281
        %v1283 = vrcp.pop %v1261
        %v1284 = vmul.f32 %v1261, %v1283
        %v1285 = vsub.f32 1.0, %v1284
        %v1286 = vmul.f32 %v1283, %v1285
        %v1287 = vadd.f32 %v1283, %v1286
        %vm1288 = vweird.f32 %v1261
        %vm1289 = vweird.f32 %v1283
        %vm1290 = vmor %vm1288, %vm1289
        %v1291 = vsel %vm1290, %v1283, %v1287
        %v1292 = vand.u32 2147483647, %v1261
        %vm1293 = vcmp.eq.f32.partialorder %v1292, 8.507059e+37
        %v1294 = vand.u32 %v1261, 2147483648
        %v1295 = vor.u32 1.1754944e-38, %v1294
        %v1296 = vsel %vm1293, %v1295, %v1291
        %v1297 = vmul.f32 1.0, %v1296
        %v1298 = vrcp.pop %v1262
        %v1299 = vmul.f32 %v1262, %v1298
        %v1300 = vsub.f32 1.0, %v1299
        %v1301 = vmul.f32 %v1298, %v1300
        %v1302 = vadd.f32 %v1298, %v1301
        %vm1303 = vweird.f32 %v1262
        %vm1304 = vweird.f32 %v1298
        %vm1305 = vmor %vm1303, %vm1304
        %v1306 = vsel %vm1305, %v1298, %v1302
        %v1307 = vand.u32 2147483647, %v1262
        %vm1308 = vcmp.eq.f32.partialorder %v1307, 8.507059e+37
        %v1309 = vand.u32 %v1262, 2147483648
        %v1310 = vor.u32 1.1754944e-38, %v1309
        %v1311 = vsel %vm1308, %v1310, %v1306
        %v1312 = vmul.f32 1.0, %v1311
        %v1313 = vrcp.pop %v1263
        %v1314 = vmul.f32 %v1263, %v1313
        %v1315 = vsub.f32 1.0, %v1314
        %v1316 = vmul.f32 %v1313, %v1315
        %v1317 = vadd.f32 %v1313, %v1316
        %vm1318 = vweird.f32 %v1263
        %vm1319 = vweird.f32 %v1313
        %vm1320 = vmor %vm1318, %vm1319
        %v1321 = vsel %vm1320, %v1313, %v1317
        %v1322 = vand.u32 2147483647, %v1263
        %vm1323 = vcmp.eq.f32.partialorder %v1322, 8.507059e+37
        %v1324 = vand.u32 %v1263, 2147483648
        %v1325 = vor.u32 1.1754944e-38, %v1324
        %v1326 = vsel %vm1323, %v1325, %v1321
        %v1327 = vmul.f32 1.0, %v1326
        %v1328 = vrcp.pop %v1264
        %v1329 = vmul.f32 %v1264, %v1328
        %v1330 = vsub.f32 1.0, %v1329
        %v1331 = vmul.f32 %v1328, %v1330
        %v1332 = vadd.f32 %v1328, %v1331
        %vm1333 = vweird.f32 %v1264
        %vm1334 = vweird.f32 %v1328
        %vm1335 = vmor %vm1333, %vm1334
        %v1336 = vsel %vm1335, %v1328, %v1332
        %v1337 = vand.u32 2147483647, %v1264
        %vm1338 = vcmp.eq.f32.partialorder %v1337, 8.507059e+37
        %v1339 = vand.u32 %v1264, 2147483648
        %v1340 = vor.u32 1.1754944e-38, %v1339
        %v1341 = vsel %vm1338, %v1340, %v1336
        %v1342 = vmul.f32 1.0, %v1341
        %v1343 = vrcp.pop %v1265
        %v1344 = vmul.f32 %v1265, %v1343
        %v1345 = vsub.f32 1.0, %v1344
        %v1346 = vmul.f32 %v1343, %v1345
        %v1347 = vadd.f32 %v1343, %v1346
        %vm1348 = vweird.f32 %v1265
        %vm1349 = vweird.f32 %v1343
        %vm1350 = vmor %vm1348, %vm1349
        %v1351 = vsel %vm1350, %v1343, %v1347
        %v1352 = vand.u32 2147483647, %v1265
        %vm1353 = vcmp.eq.f32.partialorder %v1352, 8.507059e+37
        %v1354 = vand.u32 %v1265, 2147483648
        %v1355 = vor.u32 1.1754944e-38, %v1354
        %v1356 = vsel %vm1353, %v1355, %v1351
        %v1357 = vmul.f32 1.0, %v1356
        %v1358 = vrcp.pop %v1266
        %v1359 = vmul.f32 %v1266, %v1358
        %v1360 = vsub.f32 1.0, %v1359
        %v1361 = vmul.f32 %v1358, %v1360
        %v1362 = vadd.f32 %v1358, %v1361
        %vm1363 = vweird.f32 %v1266
        %vm1364 = vweird.f32 %v1358
        %vm1365 = vmor %vm1363, %vm1364
        %v1366 = vsel %vm1365, %v1358, %v1362
        %v1367 = vand.u32 2147483647, %v1266
        %vm1368 = vcmp.eq.f32.partialorder %v1367, 8.507059e+37
        %v1369 = vand.u32 %v1266, 2147483648
        %v1370 = vor.u32 1.1754944e-38, %v1369
        %v1371 = vsel %vm1368, %v1370, %v1366
        %v1372 = vmul.f32 1.0, %v1371
        %v1373 = vrcp.pop %v1267
        %v1374 = vmul.f32 %v1267, %v1373
        %v1375 = vsub.f32 1.0, %v1374
        %v1376 = vmul.f32 %v1373, %v1375
        %v1377 = vadd.f32 %v1373, %v1376
        %vm1378 = vweird.f32 %v1267
        %vm1379 = vweird.f32 %v1373
        %vm1380 = vmor %vm1378, %vm1379
        %v1381 = vsel %vm1380, %v1373, %v1377
        %v1382 = vand.u32 2147483647, %v1267
        %vm1383 = vcmp.eq.f32.partialorder %v1382, 8.507059e+37
        %v1384 = vand.u32 %v1267, 2147483648
        %v1385 = vor.u32 1.1754944e-38, %v1384
        %v1386 = vsel %vm1383, %v1385, %v1381
        %v1387 = vmul.f32 1.0, %v1386
        %v1388 = vmul.f32 %v1213, %v1282
        %v1389 = vmul.f32 %v1216, %v1297
        %v1390 = vmul.f32 %v1219, %v1312
        %v1391 = vmul.f32 %v1222, %v1327
        %v1392 = vmul.f32 %v1225, %v1342
        %v1393 = vmul.f32 %v1228, %v1357
        %v1394 = vmul.f32 %v1231, %v1372
        %v1395 = vmul.f32 %v1234, %v1387
        %v1396 = vld [vmem:[%s6] sm:$0xff]
        %v1397 = vld [vmem:[%s6 + $0x8] sm:$0xff]
        %v1398 = vld [vmem:[%s6 + $0x10] sm:$0xff]
        %v1399 = vld [vmem:[%s6 + $0x18] sm:$0xff]
        %v1400 = vld [vmem:[%s6 + $0x20] sm:$0xff]
        %v1401 = vld [vmem:[%s6 + $0x28] sm:$0xff]
        %v1402 = vld [vmem:[%s6 + $0x30] sm:$0xff]
        %v1403 = vld [vmem:[%s6 + $0x38] sm:$0xff]
        %v1404 = vld [vmem:[%s6 + $0x40] sm:$0xff]
        %v1405 = vld [vmem:[%s6 + $0x48] sm:$0xff]
        %v1406 = vld [vmem:[%s6 + $0x50] sm:$0xff]
        %v1407 = vld [vmem:[%s6 + $0x58] sm:$0xff]
        %v1408 = vld [vmem:[%s6 + $0x60] sm:$0xff]
        %v1409 = vld [vmem:[%s6 + $0x68] sm:$0xff]
        %v1410 = vld [vmem:[%s6 + $0x70] sm:$0xff]
        %v1411 = vld [vmem:[%s6 + $0x78] sm:$0xff]
        %v1412 = vld [vmem:[%s7] sm:$0x1]
        %v1414 = vperm.slane %v1412, 0
        %1416 = vmatpush.msra.mxu0 %v1411
        %1417 = vmatpush.msra.mxu0 %v1410
        %1418 = vmatpush.msra.mxu0 %v1409
        %1419 = vmatpush.msra.mxu0 %v1408
        %1420 = vmatpush.msra.mxu0 %v1407
        %1421 = vmatpush.msra.mxu0 %v1406
        %1422 = vmatpush.msra.mxu0 %v1405
        %1423 = vmatpush.msra.mxu0 %v1404
        %1424 = vmatpush.msra.mxu0 %v1403
        %1425 = vmatpush.msra.mxu0 %v1402
        %1426 = vmatpush.msra.mxu0 %v1401
        %1427 = vmatpush.msra.mxu0 %v1400
        %1428 = vmatpush.msra.mxu0 %v1399
        %1429 = vmatpush.msra.mxu0 %v1398
        %1430 = vmatpush.msra.mxu0 %v1397
        %1431 = vmatpush.msra.mxu0 %v1396
        %1432 = vmatmul.f32.gmra.mxu0 %v1388
        %v1433 = vpop.f32.mrf.mxu0
        %v1434 = vadd.f32 %v1414, %v1433
        %1435 = vmatmul.f32.gmra.mxu0 %v1389
        %v1436 = vpop.f32.mrf.mxu0
        %v1437 = vadd.f32 %v1414, %v1436
        %1438 = vmatmul.f32.gmra.mxu0 %v1390
        %v1439 = vpop.f32.mrf.mxu0
        %v1440 = vadd.f32 %v1414, %v1439
        %1441 = vmatmul.f32.gmra.mxu0 %v1391
        %v1442 = vpop.f32.mrf.mxu0
        %v1443 = vadd.f32 %v1414, %v1442
        %1444 = vmatmul.f32.gmra.mxu0 %v1392
        %v1445 = vpop.f32.mrf.mxu0
        %v1446 = vadd.f32 %v1414, %v1445
        %1447 = vmatmul.f32.gmra.mxu0 %v1393
        %v1448 = vpop.f32.mrf.mxu0
        %v1449 = vadd.f32 %v1414, %v1448
        %1450 = vmatmul.f32.gmra.mxu0 %v1394
        %v1451 = vpop.f32.mrf.mxu0
        %v1452 = vadd.f32 %v1414, %v1451
        %1453 = vmatmul.f32.gmra.mxu0 %v1395
        %v1454 = vpop.f32.mrf.mxu0
        %v1455 = vadd.f32 %v1414, %v1454
        %1456 = vdwg.mxu0
        %v1457 = vxor.u32 %v1434, 2147483648
        %v1458 = vxor.u32 %v1437, 2147483648
        %v1459 = vxor.u32 %v1440, 2147483648
        %v1460 = vxor.u32 %v1443, 2147483648
        %v1461 = vxor.u32 %v1446, 2147483648
        %v1462 = vxor.u32 %v1449, 2147483648
        %v1463 = vxor.u32 %v1452, 2147483648
        %v1464 = vxor.u32 %v1455, 2147483648
        %v1465 = vmul.f32 %v1457, 1.442695
        %v1466 = vpow.pop %v1465
        %v1467 = vmul.f32 %v1458, 1.442695
        %v1468 = vpow.pop %v1467
        %v1469 = vmul.f32 %v1459, 1.442695
        %v1470 = vpow.pop %v1469
        %v1471 = vmul.f32 %v1460, 1.442695
        %v1472 = vpow.pop %v1471
        %v1473 = vmul.f32 %v1461, 1.442695
        %v1474 = vpow.pop %v1473
        %v1475 = vmul.f32 %v1462, 1.442695
        %v1476 = vpow.pop %v1475
        %v1477 = vmul.f32 %v1463, 1.442695
        %v1478 = vpow.pop %v1477
        %v1479 = vmul.f32 %v1464, 1.442695
        %v1480 = vpow.pop %v1479
        %v1481 = vadd.f32 %v1466, 1.0
        %v1482 = vadd.f32 %v1468, 1.0
        %v1483 = vadd.f32 %v1470, 1.0
        %v1484 = vadd.f32 %v1472, 1.0
        %v1485 = vadd.f32 %v1474, 1.0
        %v1486 = vadd.f32 %v1476, 1.0
        %v1487 = vadd.f32 %v1478, 1.0
        %v1488 = vadd.f32 %v1480, 1.0
        %v1489 = vrcp.pop %v1481
        %v1490 = vmul.f32 %v1481, %v1489
        %v1491 = vsub.f32 1.0, %v1490
        %v1492 = vmul.f32 %v1489, %v1491
        %v1493 = vadd.f32 %v1489, %v1492
        %vm1494 = vweird.f32 %v1481
        %vm1495 = vweird.f32 %v1489
        %vm1496 = vmor %vm1494, %vm1495
        %v1497 = vsel %vm1496, %v1489, %v1493
        %v1498 = vand.u32 2147483647, %v1481
        %vm1499 = vcmp.eq.f32.partialorder %v1498, 8.507059e+37
        %v1500 = vand.u32 %v1481, 2147483648
        %v1501 = vor.u32 1.1754944e-38, %v1500
        %v1502 = vsel %vm1499, %v1501, %v1497
        %v1503 = vmul.f32 1.0, %v1502
        %v1504 = vrcp.pop %v1482
        %v1505 = vmul.f32 %v1482, %v1504
        %v1506 = vsub.f32 1.0, %v1505
        %v1507 = vmul.f32 %v1504, %v1506
        %v1508 = vadd.f32 %v1504, %v1507
        %vm1509 = vweird.f32 %v1482
        %vm1510 = vweird.f32 %v1504
        %vm1511 = vmor %vm1509, %vm1510
        %v1512 = vsel %vm1511, %v1504, %v1508
        %v1513 = vand.u32 2147483647, %v1482
        %vm1514 = vcmp.eq.f32.partialorder %v1513, 8.507059e+37
        %v1515 = vand.u32 %v1482, 2147483648
        %v1516 = vor.u32 1.1754944e-38, %v1515
        %v1517 = vsel %vm1514, %v1516, %v1512
        %v1518 = vmul.f32 1.0, %v1517
        %v1519 = vrcp.pop %v1483
        %v1520 = vmul.f32 %v1483, %v1519
        %v1521 = vsub.f32 1.0, %v1520
        %v1522 = vmul.f32 %v1519, %v1521
        %v1523 = vadd.f32 %v1519, %v1522
        %vm1524 = vweird.f32 %v1483
        %vm1525 = vweird.f32 %v1519
        %vm1526 = vmor %vm1524, %vm1525
        %v1527 = vsel %vm1526, %v1519, %v1523
        %v1528 = vand.u32 2147483647, %v1483
        %vm1529 = vcmp.eq.f32.partialorder %v1528, 8.507059e+37
        %v1530 = vand.u32 %v1483, 2147483648
        %v1531 = vor.u32 1.1754944e-38, %v1530
        %v1532 = vsel %vm1529, %v1531, %v1527
        %v1533 = vmul.f32 1.0, %v1532
        %v1534 = vrcp.pop %v1484
        %v1535 = vmul.f32 %v1484, %v1534
        %v1536 = vsub.f32 1.0, %v1535
        %v1537 = vmul.f32 %v1534, %v1536
        %v1538 = vadd.f32 %v1534, %v1537
        %vm1539 = vweird.f32 %v1484
        %vm1540 = vweird.f32 %v1534
        %vm1541 = vmor %vm1539, %vm1540
        %v1542 = vsel %vm1541, %v1534, %v1538
        %v1543 = vand.u32 2147483647, %v1484
        %vm1544 = vcmp.eq.f32.partialorder %v1543, 8.507059e+37
        %v1545 = vand.u32 %v1484, 2147483648
        %v1546 = vor.u32 1.1754944e-38, %v1545
        %v1547 = vsel %vm1544, %v1546, %v1542
        %v1548 = vmul.f32 1.0, %v1547
        %v1549 = vrcp.pop %v1485
        %v1550 = vmul.f32 %v1485, %v1549
        %v1551 = vsub.f32 1.0, %v1550
        %v1552 = vmul.f32 %v1549, %v1551
        %v1553 = vadd.f32 %v1549, %v1552
        %vm1554 = vweird.f32 %v1485
        %vm1555 = vweird.f32 %v1549
        %vm1556 = vmor %vm1554, %vm1555
        %v1557 = vsel %vm1556, %v1549, %v1553
        %v1558 = vand.u32 2147483647, %v1485
        %vm1559 = vcmp.eq.f32.partialorder %v1558, 8.507059e+37
        %v1560 = vand.u32 %v1485, 2147483648
        %v1561 = vor.u32 1.1754944e-38, %v1560
        %v1562 = vsel %vm1559, %v1561, %v1557
        %v1563 = vmul.f32 1.0, %v1562
        %v1564 = vrcp.pop %v1486
        %v1565 = vmul.f32 %v1486, %v1564
        %v1566 = vsub.f32 1.0, %v1565
        %v1567 = vmul.f32 %v1564, %v1566
        %v1568 = vadd.f32 %v1564, %v1567
        %vm1569 = vweird.f32 %v1486
        %vm1570 = vweird.f32 %v1564
        %vm1571 = vmor %vm1569, %vm1570
        %v1572 = vsel %vm1571, %v1564, %v1568
        %v1573 = vand.u32 2147483647, %v1486
        %vm1574 = vcmp.eq.f32.partialorder %v1573, 8.507059e+37
        %v1575 = vand.u32 %v1486, 2147483648
        %v1576 = vor.u32 1.1754944e-38, %v1575
        %v1577 = vsel %vm1574, %v1576, %v1572
        %v1578 = vmul.f32 1.0, %v1577
        %v1579 = vrcp.pop %v1487
        %v1580 = vmul.f32 %v1487, %v1579
        %v1581 = vsub.f32 1.0, %v1580
        %v1582 = vmul.f32 %v1579, %v1581
        %v1583 = vadd.f32 %v1579, %v1582
        %vm1584 = vweird.f32 %v1487
        %vm1585 = vweird.f32 %v1579
        %vm1586 = vmor %vm1584, %vm1585
        %v1587 = vsel %vm1586, %v1579, %v1583
        %v1588 = vand.u32 2147483647, %v1487
        %vm1589 = vcmp.eq.f32.partialorder %v1588, 8.507059e+37
        %v1590 = vand.u32 %v1487, 2147483648
        %v1591 = vor.u32 1.1754944e-38, %v1590
        %v1592 = vsel %vm1589, %v1591, %v1587
        %v1593 = vmul.f32 1.0, %v1592
        %v1594 = vrcp.pop %v1488
        %v1595 = vmul.f32 %v1488, %v1594
        %v1596 = vsub.f32 1.0, %v1595
        %v1597 = vmul.f32 %v1594, %v1596
        %v1598 = vadd.f32 %v1594, %v1597
        %vm1599 = vweird.f32 %v1488
        %vm1600 = vweird.f32 %v1594
        %vm1601 = vmor %vm1599, %vm1600
        %v1602 = vsel %vm1601, %v1594, %v1598
        %v1603 = vand.u32 2147483647, %v1488
        %vm1604 = vcmp.eq.f32.partialorder %v1603, 8.507059e+37
        %v1605 = vand.u32 %v1488, 2147483648
        %v1606 = vor.u32 1.1754944e-38, %v1605
        %v1607 = vsel %vm1604, %v1606, %v1602
        %v1608 = vmul.f32 1.0, %v1607
        %v1609 = vmul.f32 %v1434, %v1503
        %v1610 = vmul.f32 %v1437, %v1518
        %v1611 = vmul.f32 %v1440, %v1533
        %v1612 = vmul.f32 %v1443, %v1548
        %v1613 = vmul.f32 %v1446, %v1563
        %v1614 = vmul.f32 %v1449, %v1578
        %v1615 = vmul.f32 %v1452, %v1593
        %v1616 = vmul.f32 %v1455, %v1608
        %1617 = vst [vmem:[%s299] sm:$0xff] %v1609
        %1618 = vst [vmem:[%s299 + $0x8] sm:$0xff] %v1610
        %1619 = vst [vmem:[%s299 + $0x10] sm:$0xff] %v1611
        %1620 = vst [vmem:[%s299 + $0x18] sm:$0xff] %v1612
        %1621 = vst [vmem:[%s299 + $0x20] sm:$0xff] %v1613
        %1622 = vst [vmem:[%s299 + $0x28] sm:$0xff] %v1614
        %1623 = vst [vmem:[%s299 + $0x30] sm:$0xff] %v1615
        %1624 = vst [vmem:[%s299 + $0x38] sm:$0xff] %v1616
        %s1625 = sand.u32 %s203, 1
        %s1626 = scalar_lea.sflag [#allocation3], %s1625
        %s1627 = sand.u32 %s203, 1
        %s1628 = smul.addr %s1627, 64
        %s1629 = scalar_lea.vmem [#allocation2], %s1628
        // Predicated region
        $region53: #{tpu_custom_call.1} parent=51 // pred_check
          %p1630 = pneg %p213
        $region54: #{tpu_custom_call.1} parent=51 // pred_check_branch
          %1632 = sbr.rel (%p1630) target = $region56
        $region55: #{tpu_custom_call.1} parent=51 // pred_region
          %s1633 = smul.u32 8, %s22
          %1635 = vsyncadd %s1626, 0
          %s1636 = smul.addr %s1633, 8
          %s1637 = scalar_lea.hbm %s8, %s1636
          %s1638 = sshll.u32 %s1629, 4
          %s1639 = int_to_ptr.vmem [resolvable:$true] %s1638
          %s1640 = sshll.u32 %s1637, 4
          %s1641 = int_to_ptr.hbm [resolvable:$true] %s1640
          %1646 = dma.vmem_to_hbm [thread:$0]  %s1639, 1024, %s1641, %s1626, 128, 128, 8
        $region56: #{tpu_custom_call.1} parent=51 // pred_fallthru
          _
      $region52: #{tpu_custom_call.1} parent=5 // pred_fallthru
        _
      %p1647 = scmp.le.s32.totalorder 2, %s17
      // Predicated region
      $region57: #{tpu_custom_call.1} parent=5 // pred_check
        %p1648 = pneg %p1647
      $region58: #{tpu_custom_call.1} parent=5 // pred_check_branch
        %1650 = sbr.rel (%p1648) target = $region60
      $region59: #{tpu_custom_call.1} parent=5 // pred_region
        %s1651 = ssub.s32 %s17, 2
        // Predicated region
        $region61: #{tpu_custom_call.1} parent=59 // pred_check
          %p1652 = pneg %p219
        $region62: #{tpu_custom_call.1} parent=59 // pred_check_branch
          %1654 = sbr.rel (%p1652) target = $region64
        $region63: #{tpu_custom_call.1} parent=59 // pred_region
          %s1655 = sand.u32 %s204, 1
          %s1656 = scalar_lea.sflag [#allocation3], %s1655
          %s1657 = sand.u32 %s204, 1
          %s1658 = smul.addr %s1657, 64
          %s1659 = scalar_lea.vmem [#allocation2], %s1658
          %1661 = dma.done %s1656, 1024
        $region64: #{tpu_custom_call.1} parent=59 // pred_fallthru
          _
      $region60: #{tpu_custom_call.1} parent=5 // pred_fallthru
        _
    $region6: #{tpu_custom_call.1} parent=1 // loop_footer
      %s21 = sadd.s32 1, %s17
    $region7: #{tpu_custom_call.1} parent=1 // loop_footer_branch
      %16 = sbr.rel target = $region3
    $region8: #{tpu_custom_call.1} parent=1 // loop_exit
      _
    %1662 = vsyncpa [#allocation3], 1
    %s1663 = scalar_lea.sflag [#allocation3], 1
    %1664 = vsyncpa %s1663, 1

</llo_original>
